<compile_context>
chip_gen: v5e
topology: v5e:2x2
jax: 0.10.0
libtpu: 0.0.40
codegen_flags: <defaults>
</compile_context>

<pallas_src>
import functools
import math

import jax
import jax.numpy as jnp
import numpy as np
from jax.experimental import pallas as pl
from jax.experimental.pallas import tpu as pltpu


def _round_up(x, m):
    return (x + m - 1) // m * m


def _tile_bytes(sub, lane, itemsize):
    """(8,128)-layout-padded VMEM footprint of a (sub, lane) block."""
    return _round_up(max(sub, 1), 8) * _round_up(max(lane, 1), 128) * itemsize


def _vmem_caps():
    """Per-generation scoped-VMEM limit and working-set budget."""
    cap = None
    try:
        info = pltpu.get_tpu_info()
        cap = getattr(info, "vmem_capacity_bytes", None)
    except Exception:
        cap = None
    if not cap:
        cap = 64 * 1024 * 1024          # conservative (v7x-sized) fallback
    limit = max(32 * 1024 * 1024, min((cap * 3) // 4, cap - 8 * 1024 * 1024))
    budget = cap // 2
    return int(limit), int(budget)


def _dcf_kernel(x_ref, w_ref, b_ref, o_ref, scr_ref, *, k, stride, tile_n, wph,
                hcap, lh, c_pad, use_slab):
    # x_ref:   (stride*lh, c_pad)  phase-reordered, flattened, channels-last input
    #                              (resident across the spatial-tile axis)
    # w_ref:   (k*k*c_pad, O)      fused weight   [slab path]
    #          (k*k, c_pad, O)     fused weight   [accumulate path]
    # b_ref:   (1, O)              bias (f32)
    # o_ref:   (tile_n, O)         output tile (flat spatial x out-channels)
    # scr_ref: (tile_n, k*k*c_pad) im2col slab    [slab path]
    #          (tile_n, O) f32     accumulator    [accumulate path]
    t = pl.program_id(1)
    base = pl.multiple_of(t * tile_n, tile_n)   # flat offset of this tile's rows

    def tap_operand(dy, dx):
        # Static per-tap offset; the wrapper-side phase decomposition makes every
        # tap a single contiguous window of tile_n flat positions (plain vld,
        # bounded live range, no lane strides, no reshape).
        off = ((dx % stride) * lh
               + ((dy % stride) * hcap + dy // stride) * wph
               + dx // stride)
        return x_ref[pl.ds(base + off, tile_n), :]          # (tile_n, c_pad)

    if use_slab:
        # Small C: build the fused (tile_n, k*k*C_pad) slab with straight copies
        # and issue one MXU matmul over K = k*k*C_pad.
        for dy in range(k):
            for dx in range(k):
                tap = dy * k + dx
                scr_ref[:, tap * c_pad:(tap + 1) * c_pad] = tap_operand(dy, dx)
        acc = jnp.dot(scr_ref[...], w_ref[...],
                      preferred_element_type=jnp.float32)
    else:
        # Large C: no slab round trip; k*k accumulating matmuls with K = C_pad.
        for dy in range(k):
            for dx in range(k):
                tap = dy * k + dx
                part = jnp.dot(tap_operand(dy, dx), w_ref[tap],
                               preferred_element_type=jnp.float32)
                if tap == 0:
                    scr_ref[...] = part
                else:
                    scr_ref[...] += part
        acc = scr_ref[...]

    o_ref[...] = (acc + b_ref[...]).astype(o_ref.dtype)


def _choose_tile_rows(h_out, wph, est_fn, budget):
    """Largest row tile whose layout-padded working set fits the VMEM budget."""
    if est_fn(h_out * wph) <= budget:
        return h_out                                  # whole image per grid step
    for tr in range(h_out - 1, 0, -1):
        if (tr * wph) % 8 != 0:                       # out/slab sublane granule
            continue
        if est_fn(tr * wph) <= budget:
            return tr
    # TODO(synk): stream rows_needed halos from HBM via manual double-buffered
    # DMA (memory_space=pl.ANY) instead of a fully resident image when even the
    # smallest legal tile does not fit the budget.
    return h_out


def conv_dcf(x, bases, weight, bias, *, stride=1, padding=0, tile_rows=None,
             matmul_dtype=None, accum_min_c=128):
    """DCF forward.  x: (N,C,H,W); bases: (B,1,k,k); weight: (O,C*B,1,1); bias: (O,)."""
    N, C, H, W = x.shape
    B = bases.shape[0]
    k = int(bases.shape[2])
    O = weight.shape[0]
    s = int(stride)
    Hp, Wp = H + 2 * padding, W + 2 * padding
    h_out = (Hp - k) // s + 1
    w_out = (Wp - k) // s + 1
    assert h_out > 0 and w_out > 0

    out_dtype = x.dtype
    mm_dtype = jnp.dtype(matmul_dtype) if matmul_dtype is not None else jnp.dtype(x.dtype)
    itemsize = mm_dtype.itemsize
    packing = max(1, 4 // itemsize)
    c_pad = _round_up(C, 8 * packing)      # sublane/packing-aligned channel count
    use_slab = c_pad < accum_min_c         # fused-slab for small C, else per-tap acc
    kk = k * k * c_pad
    wph = -(-Wp // s)                      # flat spatial pitch per output row

    vmem_limit, vmem_budget = _vmem_caps()
    out_isz = jnp.dtype(out_dtype).itemsize

    # (8,128)-layout-padding-aware working-set estimate used to pick the row tile.
    hcap0 = max(-(-Hp // s), h_out + (k - 1) // s) + 8   # slop for h_out rounding
    in_fixed = 2 * _tile_bytes(s * (s * hcap0 * wph + wph), c_pad, itemsize)

    def est(tile_n):
        b = in_fixed + 2 * _tile_bytes(1, O, 4)
        if use_slab:
            b += 2 * _tile_bytes(kk, O, itemsize)              # fused weight
            b += _tile_bytes(tile_n, kk, itemsize)             # slab scratch
        else:
            b += 2 * k * k * _tile_bytes(c_pad, O, itemsize)   # fused weight
            b += _tile_bytes(tile_n, O, 4)                     # f32 accumulator
        b += 2 * _tile_bytes(tile_n, O, out_isz)               # output tile
        return b

    if tile_rows is None:
        tile_rows = _choose_tile_rows(h_out, wph, est, vmem_budget)
    tile_rows = max(1, min(int(tile_rows), h_out))
    num_tiles = -(-h_out // tile_rows)
    ho_pad = num_tiles * tile_rows
    tile_n = tile_rows * wph
    assert num_tiles == 1 or tile_n % 8 == 0, (tile_rows, wph)

    # Per-column-phase flat length: row capacity covers the padded output rows
    # plus the tap halo; + wph tail absorbs the last tap's window overshoot.
    hcap = max(-(-Hp // s), ho_pad + (k - 1) // s)
    lh = s * hcap * wph + wph

    # ---- wrapper-side layout plumbing: zero pad, channel pad, stride phase
    #      decomposition, channels-last flatten -------------------------------
    xp = jnp.pad(x, ((0, 0), (0, c_pad - C), (padding, padding), (padding, padding)))
    xp = jnp.pad(xp, ((0, 0), (0, 0), (0, s * hcap - Hp), (0, s * wph - Wp)))
    xr = xp.reshape(N, c_pad, hcap, s, wph, s)
    # -> (N, phase_w, phase_h, idx_h, idx_w, C): inside the kernel every tap
    #    (dy, dx) becomes one contiguous window of the flattened spatial dim.
    xr = xr.transpose(0, 5, 3, 2, 4, 1).reshape(N, s, s * hcap * wph, c_pad)
    xr = jnp.pad(xr, ((0, 0), (0, 0), (0, wph), (0, 0)))
    x_k = xr.reshape(N, s * lh, c_pad).astype(mm_dtype)

    # Fold both DCF stages into one effective weight (tiny einsum, once per call):
    #   W_eff[tap, c, o] = sum_b weight[o, c*B + b] * bases[b, tap]
    w_eff = jnp.einsum('ocb,bt->tco',
                       weight.reshape(O, C, B).astype(jnp.float32),
                       bases.reshape(B, k * k).astype(jnp.float32),
                       precision=jax.lax.Precision.HIGHEST)
    w_eff = jnp.pad(w_eff, ((0, 0), (0, c_pad - C), (0, 0))).astype(mm_dtype)
    bias2 = bias.reshape(1, O).astype(jnp.float32)

    if use_slab:
        w_arg = w_eff.reshape(kk, O)                      # row = tap*c_pad + c
        w_spec = pl.BlockSpec((kk, O), lambda n, t: (0, 0))
        scratch = pltpu.VMEM((tile_n, kk), mm_dtype)
    else:
        w_arg = w_eff                                     # (k*k, c_pad, O)
        w_spec = pl.BlockSpec((k * k, c_pad, O), lambda n, t: (0, 0, 0))
        scratch = pltpu.VMEM((tile_n, O), jnp.float32)

    kernel = functools.partial(_dcf_kernel, k=k, stride=s, tile_n=tile_n, wph=wph,
                               hcap=hcap, lh=lh, c_pad=c_pad, use_slab=use_slab)

    out_flat = pl.pallas_call(
        kernel,
        out_shape=jax.ShapeDtypeStruct((N, ho_pad * wph, O), out_dtype),
        grid=(N, num_tiles),
        in_specs=[
            # Phase-reordered image: one resident block per batch element
            # (index_map ignores the tile axis -> fetched once per n).
            pl.BlockSpec((None, s * lh, c_pad), lambda n, t: (n, 0, 0)),
            w_spec,
            pl.BlockSpec((1, O), lambda n, t: (0, 0)),
        ],
        out_specs=pl.BlockSpec((None, tile_n, O), lambda n, t: (n, t, 0)),
        scratch_shapes=[scratch],
        compiler_params=pltpu.CompilerParams(
            dimension_semantics=("parallel", "arbitrary"),
            vmem_limit_bytes=vmem_limit),
    )(x_k, w_arg, bias2)

    out = out_flat.reshape(N, ho_pad, wph, O)[:, :h_out, :w_out, :]
    return out.transpose(0, 3, 1, 2)


def conv_dcf_reference(x, bases, weight, bias, *, stride=1, padding=0):
    """Pure-JAX reference mirroring the PyTorch forward exactly."""
    N, C, H, W = x.shape
    B = bases.shape[0]
    x2 = x.reshape(N * C, 1, H, W)
    feat = jax.lax.conv_general_dilated(
        x2, bases, window_strides=(stride, stride),
        padding=[(padding, padding), (padding, padding)],
        dimension_numbers=("NCHW", "OIHW", "NCHW"),
        precision=jax.lax.Precision.HIGHEST)
    ho, wo = feat.shape[2], feat.shape[3]
    feat = feat.reshape(N, C * B, ho, wo)
    out = jax.lax.conv_general_dilated(
        feat, weight, window_strides=(1, 1), padding="VALID",
        dimension_numbers=("NCHW", "OIHW", "NCHW"),
        precision=jax.lax.Precision.HIGHEST)
    return out + bias[None, :, None, None]


if __name__ == "__main__":
    key = jax.random.PRNGKey(0)

    def make_params(pkey, c_in, out_channels, kernel_size, num_bases):
        k_bases, k_w, k_b = jax.random.split(pkey, 3)
        # TODO(synk): calculate_FB_bases (Fourier-Bessel 'FB' initializer) is not
        # provided with the module source; deterministic random bases stand in.
        bases = jax.random.normal(
            k_bases, (num_bases, 1, kernel_size, kernel_size), dtype=jnp.float32)
        stdv = 1.0 / math.sqrt(c_in * num_bases)
        weight = jax.random.uniform(
            k_w, (out_channels, c_in * num_bases, 1, 1),
            minval=-stdv, maxval=stdv, dtype=jnp.float32)
        bias_p = jax.random.uniform(
            k_b, (out_channels,), minval=-stdv, maxval=stdv, dtype=jnp.float32)
        return bases, weight, bias_p

    def check(name, x, params, **kw):
        bases, weight, bias_p = params
        out = jax.block_until_ready(conv_dcf(x, bases, weight, bias_p, **kw))
        kw.pop("tile_rows", None)
        ref = conv_dcf_reference(x, bases, weight, bias_p, **kw)
        assert out.shape == ref.shape, (name, out.shape, ref.shape)
        np.testing.assert_allclose(np.asarray(out), np.asarray(ref),
                                   rtol=2e-4, atol=2e-4, err_msg=name)

    keys = jax.random.split(key, 8)

    # 1) stride=1: fused-slab path, whole image per grid step.
    x1 = jax.random.normal(keys[0], (2, 4, 16, 16), dtype=jnp.float32)
    p1 = make_params(keys[1], 4, 8, 3, 3)
    check("cfg1", x1, p1, stride=1, padding=1)

    # 2) stride=2: exercises the wrapper-side stride phase decomposition.
    x2 = jax.random.normal(keys[2], (2, 4, 32, 32), dtype=jnp.float32)
    p2 = make_params(keys[3], 4, 8, 3, 3)
    check("cfg2", x2, p2, stride=2, padding=1)

    # 3) forced spatial tiling (4 tiles of 8 rows, h_out=30 padded to 32) and a
    #    channel count that needs sublane padding (C=6 -> 8).
    x3 = jax.random.normal(keys[4], (1, 6, 30, 30), dtype=jnp.float32)
    p3 = make_params(keys[5], 6, 8, 3, 3)
    check("cfg3", x3, p3, stride=1, padding=1, tile_rows=8)

    # 4) large C: per-tap accumulating-matmul path (no im2col slab).
    x4 = jax.random.normal(keys[6], (1, 128, 8, 8), dtype=jnp.float32)
    p4 = make_params(keys[7], 128, 16, 3, 4)
    check("cfg4", x4, p4, stride=1, padding=1)

    print("KERNEL_OK")
</pallas_src>

<mosaic_0001>
module attributes {stable_mosaic.version = 11 : i64} {
  func.func @_dcf_kernel(%arg0: i32, %arg1: i32, %arg2: memref<1x342x8xf32, #tpu.memory_space<vmem>>, %arg3: memref<72x8xf32, #tpu.memory_space<vmem>>, %arg4: memref<1x8xf32, #tpu.memory_space<vmem>>, %arg5: memref<1x288x8xf32, #tpu.memory_space<vmem>>, %arg6: memref<288x72xf32, #tpu.memory_space<vmem>>) attributes {dimension_semantics = [#tpu.dimension_semantics<parallel>, #tpu.dimension_semantics<arbitrary>], iteration_bounds = array<i64: 2, 1>, scalar_prefetch = 0 : i64, scratch_operands = 1 : i64, tpu.core_type = #tpu.core_type<tc>, window_params = [{transform_indices = @transform_0, window_bounds = array<i64: 1, 342, 8>}, {pipeline_mode = #tpu.pipeline_mode<synchronous>, transform_indices = @transform_1, window_bounds = array<i64: 72, 8>}, {pipeline_mode = #tpu.pipeline_mode<synchronous>, transform_indices = @transform_2, window_bounds = array<i64: 1, 8>}, {transform_indices = @transform_3, window_bounds = array<i64: 1, 288, 8>}]} {
    %c288_i32 = arith.constant 288 : i32
    %0 = arith.muli %arg1, %c288_i32 : i32
    %1 = tpu.assume_multiple %0, 288 : i32
    %c0_i32 = arith.constant 0 : i32
    %2 = arith.addi %1, %c0_i32 : i32
    %c0 = arith.constant 0 : index
    %3 = arith.index_cast %2 : i32 to index
    %c0_0 = arith.constant 0 : index
    %4 = vector.load %arg2[%c0, %3, %c0_0] : memref<1x342x8xf32, #tpu.memory_space<vmem>>, vector<1x288x8xf32>
    %5 = vector.shape_cast %4 : vector<1x288x8xf32> to vector<288x8xf32>
    %c0_1 = arith.constant 0 : index
    %c0_2 = arith.constant 0 : index
    %6 = vector.load %arg6[%c0_1, %c0_2] : memref<288x72xf32, #tpu.memory_space<vmem>>, vector<288x8xf32>
    tpu.vector_store %arg6[%c0_1, %c0_2], %5 {strides = array<i32>} : memref<288x72xf32, #tpu.memory_space<vmem>>, vector<288x8xf32>,
    %c1_i32 = arith.constant 1 : i32
    %7 = arith.addi %1, %c1_i32 : i32
    %c0_3 = arith.constant 0 : index
    %8 = arith.index_cast %7 : i32 to index
    %c0_4 = arith.constant 0 : index
    %9 = vector.load %arg2[%c0_3, %8, %c0_4] : memref<1x342x8xf32, #tpu.memory_space<vmem>>, vector<1x288x8xf32>
    %10 = vector.shape_cast %9 : vector<1x288x8xf32> to vector<288x8xf32>
    %c0_5 = arith.constant 0 : index
    %c8 = arith.constant 8 : index
    %11 = vector.load %arg6[%c0_5, %c8] : memref<288x72xf32, #tpu.memory_space<vmem>>, vector<288x8xf32>
    tpu.vector_store %arg6[%c0_5, %c8], %10 {strides = array<i32>} : memref<288x72xf32, #tpu.memory_space<vmem>>, vector<288x8xf32>,
    %c2_i32 = arith.constant 2 : i32
    %12 = arith.addi %1, %c2_i32 : i32
    %c0_6 = arith.constant 0 : index
    %13 = arith.index_cast %12 : i32 to index
    %c0_7 = arith.constant 0 : index
    %14 = vector.load %arg2[%c0_6, %13, %c0_7] : memref<1x342x8xf32, #tpu.memory_space<vmem>>, vector<1x288x8xf32>
    %15 = vector.shape_cast %14 : vector<1x288x8xf32> to vector<288x8xf32>
    %c0_8 = arith.constant 0 : index
    %c16 = arith.constant 16 : index
    %16 = vector.load %arg6[%c0_8, %c16] : memref<288x72xf32, #tpu.memory_space<vmem>>, vector<288x8xf32>
    tpu.vector_store %arg6[%c0_8, %c16], %15 {strides = array<i32>} : memref<288x72xf32, #tpu.memory_space<vmem>>, vector<288x8xf32>,
    %c18_i32 = arith.constant 18 : i32
    %17 = arith.addi %1, %c18_i32 : i32
    %c0_9 = arith.constant 0 : index
    %18 = arith.index_cast %17 : i32 to index
    %c0_10 = arith.constant 0 : index
    %19 = vector.load %arg2[%c0_9, %18, %c0_10] : memref<1x342x8xf32, #tpu.memory_space<vmem>>, vector<1x288x8xf32>
    %20 = vector.shape_cast %19 : vector<1x288x8xf32> to vector<288x8xf32>
    %c0_11 = arith.constant 0 : index
    %c24 = arith.constant 24 : index
    %21 = vector.load %arg6[%c0_11, %c24] : memref<288x72xf32, #tpu.memory_space<vmem>>, vector<288x8xf32>
    tpu.vector_store %arg6[%c0_11, %c24], %20 {strides = array<i32>} : memref<288x72xf32, #tpu.memory_space<vmem>>, vector<288x8xf32>,
    %c19_i32 = arith.constant 19 : i32
    %22 = arith.addi %1, %c19_i32 : i32
    %c0_12 = arith.constant 0 : index
    %23 = arith.index_cast %22 : i32 to index
    %c0_13 = arith.constant 0 : index
    %24 = vector.load %arg2[%c0_12, %23, %c0_13] : memref<1x342x8xf32, #tpu.memory_space<vmem>>, vector<1x288x8xf32>
    %25 = vector.shape_cast %24 : vector<1x288x8xf32> to vector<288x8xf32>
    %c0_14 = arith.constant 0 : index
    %c32 = arith.constant 32 : index
    %26 = vector.load %arg6[%c0_14, %c32] : memref<288x72xf32, #tpu.memory_space<vmem>>, vector<288x8xf32>
    tpu.vector_store %arg6[%c0_14, %c32], %25 {strides = array<i32>} : memref<288x72xf32, #tpu.memory_space<vmem>>, vector<288x8xf32>,
    %c20_i32 = arith.constant 20 : i32
    %27 = arith.addi %1, %c20_i32 : i32
    %c0_15 = arith.constant 0 : index
    %28 = arith.index_cast %27 : i32 to index
    %c0_16 = arith.constant 0 : index
    %29 = vector.load %arg2[%c0_15, %28, %c0_16] : memref<1x342x8xf32, #tpu.memory_space<vmem>>, vector<1x288x8xf32>
    %30 = vector.shape_cast %29 : vector<1x288x8xf32> to vector<288x8xf32>
    %c0_17 = arith.constant 0 : index
    %c40 = arith.constant 40 : index
    %31 = vector.load %arg6[%c0_17, %c40] : memref<288x72xf32, #tpu.memory_space<vmem>>, vector<288x8xf32>
    tpu.vector_store %arg6[%c0_17, %c40], %30 {strides = array<i32>} : memref<288x72xf32, #tpu.memory_space<vmem>>, vector<288x8xf32>,
    %c36_i32 = arith.constant 36 : i32
    %32 = arith.addi %1, %c36_i32 : i32
    %c0_18 = arith.constant 0 : index
    %33 = arith.index_cast %32 : i32 to index
    %c0_19 = arith.constant 0 : index
    %34 = vector.load %arg2[%c0_18, %33, %c0_19] : memref<1x342x8xf32, #tpu.memory_space<vmem>>, vector<1x288x8xf32>
    %35 = vector.shape_cast %34 : vector<1x288x8xf32> to vector<288x8xf32>
    %c0_20 = arith.constant 0 : index
    %c48 = arith.constant 48 : index
    %36 = vector.load %arg6[%c0_20, %c48] : memref<288x72xf32, #tpu.memory_space<vmem>>, vector<288x8xf32>
    tpu.vector_store %arg6[%c0_20, %c48], %35 {strides = array<i32>} : memref<288x72xf32, #tpu.memory_space<vmem>>, vector<288x8xf32>,
    %c37_i32 = arith.constant 37 : i32
    %37 = arith.addi %1, %c37_i32 : i32
    %c0_21 = arith.constant 0 : index
    %38 = arith.index_cast %37 : i32 to index
    %c0_22 = arith.constant 0 : index
    %39 = vector.load %arg2[%c0_21, %38, %c0_22] : memref<1x342x8xf32, #tpu.memory_space<vmem>>, vector<1x288x8xf32>
    %40 = vector.shape_cast %39 : vector<1x288x8xf32> to vector<288x8xf32>
    %c0_23 = arith.constant 0 : index
    %c56 = arith.constant 56 : index
    %41 = vector.load %arg6[%c0_23, %c56] : memref<288x72xf32, #tpu.memory_space<vmem>>, vector<288x8xf32>
    tpu.vector_store %arg6[%c0_23, %c56], %40 {strides = array<i32>} : memref<288x72xf32, #tpu.memory_space<vmem>>, vector<288x8xf32>,
    %c38_i32 = arith.constant 38 : i32
    %42 = arith.addi %1, %c38_i32 : i32
    %c0_24 = arith.constant 0 : index
    %43 = arith.index_cast %42 : i32 to index
    %c0_25 = arith.constant 0 : index
    %44 = vector.load %arg2[%c0_24, %43, %c0_25] : memref<1x342x8xf32, #tpu.memory_space<vmem>>, vector<1x288x8xf32>
    %45 = vector.shape_cast %44 : vector<1x288x8xf32> to vector<288x8xf32>
    %c0_26 = arith.constant 0 : index
    %c64 = arith.constant 64 : index
    %46 = vector.load %arg6[%c0_26, %c64] : memref<288x72xf32, #tpu.memory_space<vmem>>, vector<288x8xf32>
    tpu.vector_store %arg6[%c0_26, %c64], %45 {strides = array<i32>} : memref<288x72xf32, #tpu.memory_space<vmem>>, vector<288x8xf32>,
    %c0_27 = arith.constant 0 : index
    %c0_28 = arith.constant 0 : index
    %47 = vector.load %arg6[%c0_27, %c0_28] : memref<288x72xf32, #tpu.memory_space<vmem>>, vector<288x72xf32>
    %c0_29 = arith.constant 0 : index
    %c0_30 = arith.constant 0 : index
    %48 = vector.load %arg3[%c0_29, %c0_30] : memref<72x8xf32, #tpu.memory_space<vmem>>, vector<72x8xf32>
    %cst = arith.constant dense<0.000000e+00> : vector<288x8xf32>
    %49 = tpu.matmul %47, %48, %cst {dimension_numbers = #tpu.dot_dimension_numbers<[1], [0], [0], [1], [0, 0, 1, 1], [], []>} : vector<288x72xf32>, vector<72x8xf32>, vector<288x8xf32> -> vector<288x8xf32>
    %c0_31 = arith.constant 0 : index
    %c0_32 = arith.constant 0 : index
    %50 = vector.load %arg4[%c0_31, %c0_32] : memref<1x8xf32, #tpu.memory_space<vmem>>, vector<1x8xf32>
    %51 = vector.broadcast %50 : vector<1x8xf32> to vector<288x8xf32>
    %52 = arith.addf %49, %51 : vector<288x8xf32>
    %c0_33 = arith.constant 0 : index
    %c0_34 = arith.constant 0 : index
    %c0_35 = arith.constant 0 : index
    %53 = vector.load %arg5[%c0_33, %c0_34, %c0_35] : memref<1x288x8xf32, #tpu.memory_space<vmem>>, vector<1x288x8xf32>
    %54 = vector.shape_cast %53 : vector<1x288x8xf32> to vector<288x8xf32>
    %55 = vector.shape_cast %52 : vector<288x8xf32> to vector<1x288x8xf32>
    tpu.vector_store %arg5[%c0_33, %c0_34, %c0_35], %55 {strides = array<i32>} : memref<1x288x8xf32, #tpu.memory_space<vmem>>, vector<1x288x8xf32>,
    return
  }
  func.func @transform_0(%arg0: i32, %arg1: i32) -> (i32, i32, i32) {
    %c0_i32 = arith.constant 0 : i32
    %c0_i32_0 = arith.constant 0 : i32
    %c0_i32_1 = arith.constant 0 : i32
    return %arg0, %c0_i32, %c0_i32_0 : i32, i32, i32
  }
  func.func @transform_1(%arg0: i32, %arg1: i32) -> (i32, i32) {
    %c0_i32 = arith.constant 0 : i32
    %c0_i32_0 = arith.constant 0 : i32
    %c0_i32_1 = arith.constant 0 : i32
    return %c0_i32, %c0_i32_0 : i32, i32
  }
  func.func @transform_2(%arg0: i32, %arg1: i32) -> (i32, i32) {
    %c0_i32 = arith.constant 0 : i32
    %c0_i32_0 = arith.constant 0 : i32
    %c0_i32_1 = arith.constant 0 : i32
    return %c0_i32, %c0_i32_0 : i32, i32
  }
  func.func @transform_3(%arg0: i32, %arg1: i32) -> (i32, i32, i32) {
    %c0_i32 = arith.constant 0 : i32
    %c0_i32_0 = arith.constant 0 : i32
    return %arg0, %arg1, %c0_i32 : i32, i32, i32
  }
}

</mosaic_0001>

<llo_original>
// kernel: tpu_custom_call.1
$region0: #{tpu_custom_call.1}
  #allocation0 [shape = 'u32[]', space=smem, size = 0x4, offset = 0x4, fixed_abs, tag = 'smem constant byte address 0x4 - core index']
  #allocation1 [shape = 'u32[72,128]{1,0:T(1,128)}', space=vmem, size = 0x9000, scoped, tag = 'internal scratch']
  #allocation2 [shape = 'f32[288,72]{1,0:T(8,128)}', space=vmem, size = 0x24000, scoped, tag = 'scratch operand']
  %s0 = inlined_call_operand.vmem [shape: f32[2,342,8], index: 0, kind: input, shape index: {}]
  %s1 = inlined_call_operand.vmem [shape: f32[72,8], index: 1, kind: input, shape index: {}]
  %s2 = inlined_call_operand.vmem [shape: f32[1,8], index: 2, kind: input, shape index: {}]
  %s3 = inlined_call_operand.vmem [shape: f32[2,288,8], index: 3, kind: output, shape index: {}]
  %s4 = sld [smem:[#allocation0]]
  $region45: #{tpu_custom_call.1} parent=0
    _
  %s6 = ssub.s32 1, %s4
  %s7 = scalar_select 0, %s6, %s4
  loop: start=0, step=1, limit=4
  $region2: #{tpu_custom_call.1} parent=0 // loop_pre_header
    _
  $region3: #{tpu_custom_call.1} parent=0 // loop_header
    %s9 = sphi 0, %s13
    %p10 = scmp.ge.s32.totalorder %s9, 4
    %s16 = sphi 0, %s28
    %s17 = sphi 0, %s24
    %s18 = sphi 0, %s16
    %s19 = sphi 0, %s17
    %s20 = sphi 0, %s18
    %s21 = sphi 0, %s19
    %s31 = sphi 0, %s33
    %s34 = sphi 0, %s31
    %s35 = sphi 0, %s34
    %s51 = sphi 0, %s35
    %s55 = sphi 0, %s55
    %s57 = sphi 0, %s55
    %s58 = sphi 0, %s57
    %s72 = sphi 0, %s58
    %s76 = sphi 0, %s76
    %s78 = sphi 0, %s76
    %s79 = sphi 0, %s78
    %s93 = sphi 0, %s79
    %s101 = sphi 0, %s103
    %s104 = sphi 0, %s101
    %s105 = sphi 0, %s104
    %s121 = sphi 0, %s105
  $region4: #{tpu_custom_call.1} parent=0 // loop_header_branch
    %12 = sbr.rel (%p10) target = $region8
  $region5: #{tpu_custom_call.1} parent=0 // loop_body
    %s14 = ssub.s32 %s9, 1
    %s15 = ssub.s32 %s9, 2
    %s22 = sadd.s32 1, %s17
    %p23 = scmp.ge.s32.totalorder %s22, 1
    %s24 = scalar_select %p23, 0, %s22
    %s25 = sadd.s32 1, %s16
    %s26 = scalar_select %p23, %s25, %s16
    %p27 = scmp.ge.s32.totalorder %s26, 2
    %s28 = scalar_select %p27, 0, %s26
    %s29 = ssub.s32 %s16, %s28
    %p30 = scmp.eq.s32.totalorder %s29, 0
    %s32 = sadd.s32 %s31, 1
    %s33 = scalar_select %p30, %s31, %s32
    %p36 = pneg %p30
    %p37 = scmp.eq.s32.totalorder %s9, 1
    %p38 = por %p36, %p37
    %p39 = scmp.ne.s32.totalorder %s31, %s34
    %p40 = scmp.eq.s32.totalorder %s9, 0
    %p41 = por %p39, %p40
    %p42 = scmp.ne.s32.totalorder %s31, %s34
    %p43 = scmp.eq.s32.totalorder %s14, 1
    %p44 = por %p42, %p43
    %p45 = scmp.ne.s32.totalorder %s34, %s35
    %p46 = scmp.eq.s32.totalorder %s14, 0
    %p47 = por %p45, %p46
    %p48 = scmp.ne.s32.totalorder %s34, %s35
    %p49 = scmp.eq.s32.totalorder %s15, 1
    %p50 = por %p48, %p49
    %p52 = scmp.ne.s32.totalorder %s35, %s51
    %p53 = scmp.eq.s32.totalorder %s15, 0
    %p54 = por %p52, %p53
    %s56 = sadd.s32 %s55, 1
    %p59 = scmp.eq.s32.totalorder %s9, 1
    %p60 = scmp.ne.s32.totalorder %s55, %s57
    %p61 = scmp.eq.s32.totalorder %s9, 0
    %p62 = por %p60, %p61
    %p63 = scmp.ne.s32.totalorder %s55, %s57
    %p64 = scmp.eq.s32.totalorder %s14, 1
    %p65 = por %p63, %p64
    %p66 = scmp.ne.s32.totalorder %s57, %s58
    %p67 = scmp.eq.s32.totalorder %s14, 0
    %p68 = por %p66, %p67
    %p69 = scmp.ne.s32.totalorder %s57, %s58
    %p70 = scmp.eq.s32.totalorder %s15, 1
    %p71 = por %p69, %p70
    %p73 = scmp.ne.s32.totalorder %s58, %s72
    %p74 = scmp.eq.s32.totalorder %s15, 0
    %p75 = por %p73, %p74
    %s77 = sadd.s32 %s76, 1
    %p80 = scmp.eq.s32.totalorder %s9, 1
    %p81 = scmp.ne.s32.totalorder %s76, %s78
    %p82 = scmp.eq.s32.totalorder %s9, 0
    %p83 = por %p81, %p82
    %p84 = scmp.ne.s32.totalorder %s76, %s78
    %p85 = scmp.eq.s32.totalorder %s14, 1
    %p86 = por %p84, %p85
    %p87 = scmp.ne.s32.totalorder %s78, %s79
    %p88 = scmp.eq.s32.totalorder %s14, 0
    %p89 = por %p87, %p88
    %p90 = scmp.ne.s32.totalorder %s78, %s79
    %p91 = scmp.eq.s32.totalorder %s15, 1
    %p92 = por %p90, %p91
    %p94 = scmp.ne.s32.totalorder %s79, %s93
    %p95 = scmp.eq.s32.totalorder %s15, 0
    %p96 = por %p94, %p95
    %s97 = ssub.s32 %s16, %s28
    %s98 = ssub.s32 %s17, %s24
    %s99 = sor.u32 %s97, %s98
    %p100 = scmp.eq.s32.totalorder %s99, 0
    %s102 = sadd.s32 %s101, 1
    %s103 = scalar_select %p100, %s101, %s102
    %p106 = pneg %p100
    %p107 = scmp.eq.s32.totalorder %s9, 1
    %p108 = por %p106, %p107
    %p109 = scmp.ne.s32.totalorder %s101, %s104
    %p110 = scmp.eq.s32.totalorder %s9, 0
    %p111 = por %p109, %p110
    %p112 = scmp.ne.s32.totalorder %s101, %s104
    %p113 = scmp.eq.s32.totalorder %s14, 1
    %p114 = por %p112, %p113
    %p115 = scmp.ne.s32.totalorder %s104, %s105
    %p116 = scmp.eq.s32.totalorder %s14, 0
    %p117 = por %p115, %p116
    %p118 = scmp.ne.s32.totalorder %s104, %s105
    %p119 = scmp.eq.s32.totalorder %s15, 1
    %p120 = por %p118, %p119
    %p122 = scmp.ne.s32.totalorder %s105, %s121
    %p123 = scmp.eq.s32.totalorder %s15, 0
    %p124 = por %p122, %p123
    %p125 = scmp.le.s32.totalorder 1, %s9
    %p126 = scmp.lt.s32.totalorder %s9, 3
    %p127 = pnand %p125, %p126
    %p128 = pneg %p127
    // Predicated region
    $region9: #{tpu_custom_call.1} parent=5 // pred_check
      _
    $region10: #{tpu_custom_call.1} parent=5 // pred_check_branch
      %130 = sbr.rel (%p127) target = $region12
    $region11: #{tpu_custom_call.1} parent=5 // pred_region
      %s131 = ssub.s32 %s9, 1
      // Predicated region
      $region13: #{tpu_custom_call.1} parent=11 // pred_check
        %p132 = pneg %p68
      $region14: #{tpu_custom_call.1} parent=11 // pred_check_branch
        %134 = sbr.rel (%p132) target = $region16
      $region15: #{tpu_custom_call.1} parent=11 // pred_region
        _
      $region16: #{tpu_custom_call.1} parent=11 // pred_fallthru
        _
      // Predicated region
      $region17: #{tpu_custom_call.1} parent=11 // pred_check
        %p135 = pneg %p89
      $region18: #{tpu_custom_call.1} parent=11 // pred_check_branch
        %137 = sbr.rel (%p135) target = $region20
      $region19: #{tpu_custom_call.1} parent=11 // pred_region
        _
      $region20: #{tpu_custom_call.1} parent=11 // pred_fallthru
        _
    $region12: #{tpu_custom_call.1} parent=5 // pred_fallthru
      _
    %p138 = scmp.lt.s32.totalorder %s9, 2
    // Predicated region
    $region21: #{tpu_custom_call.1} parent=5 // pred_check
      %p139 = pneg %p138
    $region22: #{tpu_custom_call.1} parent=5 // pred_check_branch
      %141 = sbr.rel (%p139) target = $region24
    $region23: #{tpu_custom_call.1} parent=5 // pred_region
      // Predicated region
      $region25: #{tpu_custom_call.1} parent=23 // pred_check
        %p142 = pneg %p41
      $region26: #{tpu_custom_call.1} parent=23 // pred_check_branch
        %144 = sbr.rel (%p142) target = $region28
      $region27: #{tpu_custom_call.1} parent=23 // pred_region
        %p145 = scmp.lt.s32.totalorder %s16, 1
        %s146 = scalar_select %p145, %s16, 1
        %s147 = smul.addr %s146, 43
        %s148 = smul.addr %s147, 8
        %s149 = scalar_lea.vmem %s0, %s148
      $region28: #{tpu_custom_call.1} parent=23 // pred_fallthru
        _
    $region24: #{tpu_custom_call.1} parent=5 // pred_fallthru
      _
    %p150 = scmp.le.s32.totalorder 1, %s9
    %p151 = scmp.lt.s32.totalorder %s9, 3
    %p152 = pnand %p150, %p151
    %p153 = pneg %p152
    // Predicated region
    $region29: #{tpu_custom_call.1} parent=5 // pred_check
      _
    $region30: #{tpu_custom_call.1} parent=5 // pred_check_branch
      %155 = sbr.rel (%p152) target = $region32
    $region31: #{tpu_custom_call.1} parent=5 // pred_region
      %s156 = ssub.s32 %s9, 1
      %p157 = scmp.lt.s32.totalorder %s18, 1
      %s158 = scalar_select %p157, %s18, 1
      %s159 = smul.addr %s158, 43
      %s160 = smul.addr %s159, 8
      %s161 = scalar_lea.vmem %s0, %s160
      %p162 = pneg %p47
      %p163 = pneg %p44
      %p164 = pneg %p68
      %p165 = pneg %p65
      %p166 = pneg %p89
      %p167 = pneg %p86
      %p168 = pneg %p117
      %p169 = pneg %p114
      %s170 = smul.u32 36, %s19
      %p171 = scmp.lt.s32.totalorder %s18, 1
      %s172 = scalar_select %p171, %s18, 1
      %p173 = scmp.lt.s32.totalorder %s170, 35
      %s174 = scalar_select %p173, %s170, 35
      %s175 = smul.addr %s172, 36
      %s176 = sadd.s32 %s174, %s175
      %s177 = smul.addr %s176, 8
      %s178 = scalar_lea.vmem %s3, %s177
      %p179 = scmp.lt.s32.totalorder %s18, 1
      %s180 = scalar_select %p179, %s18, 1
      %s181 = smul.addr %s180, 43
      %s182 = smul.addr %s181, 8
      %s183 = scalar_lea.vmem %s0, %s182
      %s184 = smul.u32 36, %s19
      %p185 = scmp.lt.s32.totalorder %s18, 1
      %s186 = scalar_select %p185, %s18, 1
      %p187 = scmp.lt.s32.totalorder %s184, 35
      %s188 = scalar_select %p187, %s184, 35
      %s189 = smul.addr %s186, 36
      %s190 = sadd.s32 %s188, %s189
      %s191 = smul.addr %s190, 8
      %s192 = scalar_lea.vmem %s3, %s191
      %s193 = smul.u32 36, %s19
      %s194 = smul.u32 %s19, 288
      %s195 = scalar_lea.vmem %s183, %s194
      %v196 = vld [vmem:[%s195] sm:$0xff]
      %v197 = vld [vmem:[%s195 + $0x8] sm:$0xff]
      %v198 = vld [vmem:[%s195 + $0x10] sm:$0xff]
      %v199 = vld [vmem:[%s195 + $0x18] sm:$0xff]
      %v200 = vld [vmem:[%s195 + $0x20] sm:$0xff]
      %v201 = vld [vmem:[%s195 + $0x28] sm:$0xff]
      %v202 = vld [vmem:[%s195 + $0x30] sm:$0xff]
      %v203 = vld [vmem:[%s195 + $0x38] sm:$0xff]
      %v204 = vld [vmem:[%s195 + $0x40] sm:$0xff]
      %v205 = vld [vmem:[%s195 + $0x48] sm:$0xff]
      %v206 = vld [vmem:[%s195 + $0x50] sm:$0xff]
      %v207 = vld [vmem:[%s195 + $0x58] sm:$0xff]
      %v208 = vld [vmem:[%s195 + $0x60] sm:$0xff]
      %v209 = vld [vmem:[%s195 + $0x68] sm:$0xff]
      %v210 = vld [vmem:[%s195 + $0x70] sm:$0xff]
      %v211 = vld [vmem:[%s195 + $0x78] sm:$0xff]
      %v212 = vld [vmem:[%s195 + $0x80] sm:$0xff]
      %v213 = vld [vmem:[%s195 + $0x88] sm:$0xff]
      %v214 = vld [vmem:[%s195 + $0x90] sm:$0xff]
      %v215 = vld [vmem:[%s195 + $0x98] sm:$0xff]
      %v216 = vld [vmem:[%s195 + $0xa0] sm:$0xff]
      %v217 = vld [vmem:[%s195 + $0xa8] sm:$0xff]
      %v218 = vld [vmem:[%s195 + $0xb0] sm:$0xff]
      %v219 = vld [vmem:[%s195 + $0xb8] sm:$0xff]
      %v220 = vld [vmem:[%s195 + $0xc0] sm:$0xff]
      %v221 = vld [vmem:[%s195 + $0xc8] sm:$0xff]
      %v222 = vld [vmem:[%s195 + $0xd0] sm:$0xff]
      %v223 = vld [vmem:[%s195 + $0xd8] sm:$0xff]
      %v224 = vld [vmem:[%s195 + $0xe0] sm:$0xff]
      %v225 = vld [vmem:[%s195 + $0xe8] sm:$0xff]
      %v226 = vld [vmem:[%s195 + $0xf0] sm:$0xff]
      %v227 = vld [vmem:[%s195 + $0xf8] sm:$0xff]
      %v228 = vld [vmem:[%s195 + $0x100] sm:$0xff]
      %v229 = vld [vmem:[%s195 + $0x108] sm:$0xff]
      %v230 = vld [vmem:[%s195 + $0x110] sm:$0xff]
      %v231 = vld [vmem:[%s195 + $0x118] sm:$0xff]
      %vm232 = vcmask 64512
      %233 = vst.msk [vmem:[#allocation2] sm:$0xff] %vm232, %v196
      %234 = vst.msk [vmem:[#allocation2 + $0x8] sm:$0xff] %vm232, %v197
      %235 = vst.msk [vmem:[#allocation2 + $0x10] sm:$0xff] %vm232, %v198
      %236 = vst.msk [vmem:[#allocation2 + $0x18] sm:$0xff] %vm232, %v199
      %237 = vst.msk [vmem:[#allocation2 + $0x20] sm:$0xff] %vm232, %v200
      %238 = vst.msk [vmem:[#allocation2 + $0x28] sm:$0xff] %vm232, %v201
      %239 = vst.msk [vmem:[#allocation2 + $0x30] sm:$0xff] %vm232, %v202
      %240 = vst.msk [vmem:[#allocation2 + $0x38] sm:$0xff] %vm232, %v203
      %241 = vst.msk [vmem:[#allocation2 + $0x40] sm:$0xff] %vm232, %v204
      %242 = vst.msk [vmem:[#allocation2 + $0x48] sm:$0xff] %vm232, %v205
      %243 = vst.msk [vmem:[#allocation2 + $0x50] sm:$0xff] %vm232, %v206
      %244 = vst.msk [vmem:[#allocation2 + $0x58] sm:$0xff] %vm232, %v207
      %245 = vst.msk [vmem:[#allocation2 + $0x60] sm:$0xff] %vm232, %v208
      %246 = vst.msk [vmem:[#allocation2 + $0x68] sm:$0xff] %vm232, %v209
      %247 = vst.msk [vmem:[#allocation2 + $0x70] sm:$0xff] %vm232, %v210
      %248 = vst.msk [vmem:[#allocation2 + $0x78] sm:$0xff] %vm232, %v211
      %249 = vst.msk [vmem:[#allocation2 + $0x80] sm:$0xff] %vm232, %v212
      %250 = vst.msk [vmem:[#allocation2 + $0x88] sm:$0xff] %vm232, %v213
      %251 = vst.msk [vmem:[#allocation2 + $0x90] sm:$0xff] %vm232, %v214
      %252 = vst.msk [vmem:[#allocation2 + $0x98] sm:$0xff] %vm232, %v215
      %253 = vst.msk [vmem:[#allocation2 + $0xa0] sm:$0xff] %vm232, %v216
      %254 = vst.msk [vmem:[#allocation2 + $0xa8] sm:$0xff] %vm232, %v217
      %255 = vst.msk [vmem:[#allocation2 + $0xb0] sm:$0xff] %vm232, %v218
      %256 = vst.msk [vmem:[#allocation2 + $0xb8] sm:$0xff] %vm232, %v219
      %257 = vst.msk [vmem:[#allocation2 + $0xc0] sm:$0xff] %vm232, %v220
      %258 = vst.msk [vmem:[#allocation2 + $0xc8] sm:$0xff] %vm232, %v221
      %259 = vst.msk [vmem:[#allocation2 + $0xd0] sm:$0xff] %vm232, %v222
      %260 = vst.msk [vmem:[#allocation2 + $0xd8] sm:$0xff] %vm232, %v223
      %261 = vst.msk [vmem:[#allocation2 + $0xe0] sm:$0xff] %vm232, %v224
      %262 = vst.msk [vmem:[#allocation2 + $0xe8] sm:$0xff] %vm232, %v225
      %263 = vst.msk [vmem:[#allocation2 + $0xf0] sm:$0xff] %vm232, %v226
      %264 = vst.msk [vmem:[#allocation2 + $0xf8] sm:$0xff] %vm232, %v227
      %265 = vst.msk [vmem:[#allocation2 + $0x100] sm:$0xff] %vm232, %v228
      %266 = vst.msk [vmem:[#allocation2 + $0x108] sm:$0xff] %vm232, %v229
      %267 = vst.msk [vmem:[#allocation2 + $0x110] sm:$0xff] %vm232, %v230
      %268 = vst.msk [vmem:[#allocation2 + $0x118] sm:$0xff] %vm232, %v231
      %s269 = sadd.s32 %s194, 1
      %s270 = scalar_lea.vmem %s183, %s269
      %v271 = vld [vmem:[%s270] sm:$0xff]
      %v272 = vld [vmem:[%s270 + $0x8] sm:$0xff]
      %v273 = vld [vmem:[%s270 + $0x10] sm:$0xff]
      %v274 = vld [vmem:[%s270 + $0x18] sm:$0xff]
      %v275 = vld [vmem:[%s270 + $0x20] sm:$0xff]
      %v276 = vld [vmem:[%s270 + $0x28] sm:$0xff]
      %v277 = vld [vmem:[%s270 + $0x30] sm:$0xff]
      %v278 = vld [vmem:[%s270 + $0x38] sm:$0xff]
      %v279 = vld [vmem:[%s270 + $0x40] sm:$0xff]
      %v280 = vld [vmem:[%s270 + $0x48] sm:$0xff]
      %v281 = vld [vmem:[%s270 + $0x50] sm:$0xff]
      %v282 = vld [vmem:[%s270 + $0x58] sm:$0xff]
      %v283 = vld [vmem:[%s270 + $0x60] sm:$0xff]
      %v284 = vld [vmem:[%s270 + $0x68] sm:$0xff]
      %v285 = vld [vmem:[%s270 + $0x70] sm:$0xff]
      %v286 = vld [vmem:[%s270 + $0x78] sm:$0xff]
      %v287 = vld [vmem:[%s270 + $0x80] sm:$0xff]
      %v288 = vld [vmem:[%s270 + $0x88] sm:$0xff]
      %v289 = vld [vmem:[%s270 + $0x90] sm:$0xff]
      %v290 = vld [vmem:[%s270 + $0x98] sm:$0xff]
      %v291 = vld [vmem:[%s270 + $0xa0] sm:$0xff]
      %v292 = vld [vmem:[%s270 + $0xa8] sm:$0xff]
      %v293 = vld [vmem:[%s270 + $0xb0] sm:$0xff]
      %v294 = vld [vmem:[%s270 + $0xb8] sm:$0xff]
      %v295 = vld [vmem:[%s270 + $0xc0] sm:$0xff]
      %v296 = vld [vmem:[%s270 + $0xc8] sm:$0xff]
      %v297 = vld [vmem:[%s270 + $0xd0] sm:$0xff]
      %v298 = vld [vmem:[%s270 + $0xd8] sm:$0xff]
      %v299 = vld [vmem:[%s270 + $0xe0] sm:$0xff]
      %v300 = vld [vmem:[%s270 + $0xe8] sm:$0xff]
      %v301 = vld [vmem:[%s270 + $0xf0] sm:$0xff]
      %v302 = vld [vmem:[%s270 + $0xf8] sm:$0xff]
      %v303 = vld [vmem:[%s270 + $0x100] sm:$0xff]
      %v304 = vld [vmem:[%s270 + $0x108] sm:$0xff]
      %v305 = vld [vmem:[%s270 + $0x110] sm:$0xff]
      %v306 = vld [vmem:[%s270 + $0x118] sm:$0xff]
      %343 = vrot.lane.b32.xlu0 %v271, 8
      %v344 = vpop.permute.xlu0 %343
      %345 = vrot.lane.b32.xlu0 %v272, 8
      %v346 = vpop.permute.xlu0 %345
      %347 = vrot.lane.b32.xlu0 %v273, 8
      %v348 = vpop.permute.xlu0 %347
      %349 = vrot.lane.b32.xlu0 %v274, 8
      %v350 = vpop.permute.xlu0 %349
      %351 = vrot.lane.b32.xlu0 %v275, 8
      %v352 = vpop.permute.xlu0 %351
      %353 = vrot.lane.b32.xlu0 %v276, 8
      %v354 = vpop.permute.xlu0 %353
      %355 = vrot.lane.b32.xlu0 %v277, 8
      %v356 = vpop.permute.xlu0 %355
      %357 = vrot.lane.b32.xlu0 %v278, 8
      %v358 = vpop.permute.xlu0 %357
      %359 = vrot.lane.b32.xlu0 %v279, 8
      %v360 = vpop.permute.xlu0 %359
      %361 = vrot.lane.b32.xlu0 %v280, 8
      %v362 = vpop.permute.xlu0 %361
      %363 = vrot.lane.b32.xlu0 %v281, 8
      %v364 = vpop.permute.xlu0 %363
      %365 = vrot.lane.b32.xlu0 %v282, 8
      %v366 = vpop.permute.xlu0 %365
      %367 = vrot.lane.b32.xlu0 %v283, 8
      %v368 = vpop.permute.xlu0 %367
      %369 = vrot.lane.b32.xlu0 %v284, 8
      %v370 = vpop.permute.xlu0 %369
      %371 = vrot.lane.b32.xlu0 %v285, 8
      %v372 = vpop.permute.xlu0 %371
      %373 = vrot.lane.b32.xlu0 %v286, 8
      %v374 = vpop.permute.xlu0 %373
      %375 = vrot.lane.b32.xlu0 %v287, 8
      %v376 = vpop.permute.xlu0 %375
      %377 = vrot.lane.b32.xlu0 %v288, 8
      %v378 = vpop.permute.xlu0 %377
      %379 = vrot.lane.b32.xlu0 %v289, 8
      %v380 = vpop.permute.xlu0 %379
      %381 = vrot.lane.b32.xlu0 %v290, 8
      %v382 = vpop.permute.xlu0 %381
      %383 = vrot.lane.b32.xlu0 %v291, 8
      %v384 = vpop.permute.xlu0 %383
      %385 = vrot.lane.b32.xlu0 %v292, 8
      %v386 = vpop.permute.xlu0 %385
      %387 = vrot.lane.b32.xlu0 %v293, 8
      %v388 = vpop.permute.xlu0 %387
      %389 = vrot.lane.b32.xlu0 %v294, 8
      %v390 = vpop.permute.xlu0 %389
      %391 = vrot.lane.b32.xlu0 %v295, 8
      %v392 = vpop.permute.xlu0 %391
      %393 = vrot.lane.b32.xlu0 %v296, 8
      %v394 = vpop.permute.xlu0 %393
      %395 = vrot.lane.b32.xlu0 %v297, 8
      %v396 = vpop.permute.xlu0 %395
      %397 = vrot.lane.b32.xlu0 %v298, 8
      %v398 = vpop.permute.xlu0 %397
      %399 = vrot.lane.b32.xlu0 %v299, 8
      %v400 = vpop.permute.xlu0 %399
      %401 = vrot.lane.b32.xlu0 %v300, 8
      %v402 = vpop.permute.xlu0 %401
      %403 = vrot.lane.b32.xlu0 %v301, 8
      %v404 = vpop.permute.xlu0 %403
      %405 = vrot.lane.b32.xlu0 %v302, 8
      %v406 = vpop.permute.xlu0 %405
      %407 = vrot.lane.b32.xlu0 %v303, 8
      %v408 = vpop.permute.xlu0 %407
      %409 = vrot.lane.b32.xlu0 %v304, 8
      %v410 = vpop.permute.xlu0 %409
      %411 = vrot.lane.b32.xlu0 %v305, 8
      %v412 = vpop.permute.xlu0 %411
      %413 = vrot.lane.b32.xlu0 %v306, 8
      %v414 = vpop.permute.xlu0 %413
      %vm451 = vcmask 130112
      %452 = vst.msk [vmem:[#allocation2] sm:$0xff] %vm451, %v344
      %453 = vst.msk [vmem:[#allocation2 + $0x8] sm:$0xff] %vm451, %v346
      %454 = vst.msk [vmem:[#allocation2 + $0x10] sm:$0xff] %vm451, %v348
      %455 = vst.msk [vmem:[#allocation2 + $0x18] sm:$0xff] %vm451, %v350
      %456 = vst.msk [vmem:[#allocation2 + $0x20] sm:$0xff] %vm451, %v352
      %457 = vst.msk [vmem:[#allocation2 + $0x28] sm:$0xff] %vm451, %v354
      %458 = vst.msk [vmem:[#allocation2 + $0x30] sm:$0xff] %vm451, %v356
      %459 = vst.msk [vmem:[#allocation2 + $0x38] sm:$0xff] %vm451, %v358
      %460 = vst.msk [vmem:[#allocation2 + $0x40] sm:$0xff] %vm451, %v360
      %461 = vst.msk [vmem:[#allocation2 + $0x48] sm:$0xff] %vm451, %v362
      %462 = vst.msk [vmem:[#allocation2 + $0x50] sm:$0xff] %vm451, %v364
      %463 = vst.msk [vmem:[#allocation2 + $0x58] sm:$0xff] %vm451, %v366
      %464 = vst.msk [vmem:[#allocation2 + $0x60] sm:$0xff] %vm451, %v368
      %465 = vst.msk [vmem:[#allocation2 + $0x68] sm:$0xff] %vm451, %v370
      %466 = vst.msk [vmem:[#allocation2 + $0x70] sm:$0xff] %vm451, %v372
      %467 = vst.msk [vmem:[#allocation2 + $0x78] sm:$0xff] %vm451, %v374
      %468 = vst.msk [vmem:[#allocation2 + $0x80] sm:$0xff] %vm451, %v376
      %469 = vst.msk [vmem:[#allocation2 + $0x88] sm:$0xff] %vm451, %v378
      %470 = vst.msk [vmem:[#allocation2 + $0x90] sm:$0xff] %vm451, %v380
      %471 = vst.msk [vmem:[#allocation2 + $0x98] sm:$0xff] %vm451, %v382
      %472 = vst.msk [vmem:[#allocation2 + $0xa0] sm:$0xff] %vm451, %v384
      %473 = vst.msk [vmem:[#allocation2 + $0xa8] sm:$0xff] %vm451, %v386
      %474 = vst.msk [vmem:[#allocation2 + $0xb0] sm:$0xff] %vm451, %v388
      %475 = vst.msk [vmem:[#allocation2 + $0xb8] sm:$0xff] %vm451, %v390
      %476 = vst.msk [vmem:[#allocation2 + $0xc0] sm:$0xff] %vm451, %v392
      %477 = vst.msk [vmem:[#allocation2 + $0xc8] sm:$0xff] %vm451, %v394
      %478 = vst.msk [vmem:[#allocation2 + $0xd0] sm:$0xff] %vm451, %v396
      %479 = vst.msk [vmem:[#allocation2 + $0xd8] sm:$0xff] %vm451, %v398
      %480 = vst.msk [vmem:[#allocation2 + $0xe0] sm:$0xff] %vm451, %v400
      %481 = vst.msk [vmem:[#allocation2 + $0xe8] sm:$0xff] %vm451, %v402
      %482 = vst.msk [vmem:[#allocation2 + $0xf0] sm:$0xff] %vm451, %v404
      %483 = vst.msk [vmem:[#allocation2 + $0xf8] sm:$0xff] %vm451, %v406
      %484 = vst.msk [vmem:[#allocation2 + $0x100] sm:$0xff] %vm451, %v408
      %485 = vst.msk [vmem:[#allocation2 + $0x108] sm:$0xff] %vm451, %v410
      %486 = vst.msk [vmem:[#allocation2 + $0x110] sm:$0xff] %vm451, %v412
      %487 = vst.msk [vmem:[#allocation2 + $0x118] sm:$0xff] %vm451, %v414
      %s488 = sadd.s32 %s194, 2
      %s489 = scalar_lea.vmem %s183, %s488
      %v490 = vld [vmem:[%s489] sm:$0xff]
      %v491 = vld [vmem:[%s489 + $0x8] sm:$0xff]
      %v492 = vld [vmem:[%s489 + $0x10] sm:$0xff]
      %v493 = vld [vmem:[%s489 + $0x18] sm:$0xff]
      %v494 = vld [vmem:[%s489 + $0x20] sm:$0xff]
      %v495 = vld [vmem:[%s489 + $0x28] sm:$0xff]
      %v496 = vld [vmem:[%s489 + $0x30] sm:$0xff]
      %v497 = vld [vmem:[%s489 + $0x38] sm:$0xff]
      %v498 = vld [vmem:[%s489 + $0x40] sm:$0xff]
      %v499 = vld [vmem:[%s489 + $0x48] sm:$0xff]
      %v500 = vld [vmem:[%s489 + $0x50] sm:$0xff]
      %v501 = vld [vmem:[%s489 + $0x58] sm:$0xff]
      %v502 = vld [vmem:[%s489 + $0x60] sm:$0xff]
      %v503 = vld [vmem:[%s489 + $0x68] sm:$0xff]
      %v504 = vld [vmem:[%s489 + $0x70] sm:$0xff]
      %v505 = vld [vmem:[%s489 + $0x78] sm:$0xff]
      %v506 = vld [vmem:[%s489 + $0x80] sm:$0xff]
      %v507 = vld [vmem:[%s489 + $0x88] sm:$0xff]
      %v508 = vld [vmem:[%s489 + $0x90] sm:$0xff]
      %v509 = vld [vmem:[%s489 + $0x98] sm:$0xff]
      %v510 = vld [vmem:[%s489 + $0xa0] sm:$0xff]
      %v511 = vld [vmem:[%s489 + $0xa8] sm:$0xff]
      %v512 = vld [vmem:[%s489 + $0xb0] sm:$0xff]
      %v513 = vld [vmem:[%s489 + $0xb8] sm:$0xff]
      %v514 = vld [vmem:[%s489 + $0xc0] sm:$0xff]
      %v515 = vld [vmem:[%s489 + $0xc8] sm:$0xff]
      %v516 = vld [vmem:[%s489 + $0xd0] sm:$0xff]
      %v517 = vld [vmem:[%s489 + $0xd8] sm:$0xff]
      %v518 = vld [vmem:[%s489 + $0xe0] sm:$0xff]
      %v519 = vld [vmem:[%s489 + $0xe8] sm:$0xff]
      %v520 = vld [vmem:[%s489 + $0xf0] sm:$0xff]
      %v521 = vld [vmem:[%s489 + $0xf8] sm:$0xff]
      %v522 = vld [vmem:[%s489 + $0x100] sm:$0xff]
      %v523 = vld [vmem:[%s489 + $0x108] sm:$0xff]
      %v524 = vld [vmem:[%s489 + $0x110] sm:$0xff]
      %v525 = vld [vmem:[%s489 + $0x118] sm:$0xff]
      %562 = vrot.lane.b32.xlu0 %v490, 16
      %v563 = vpop.permute.xlu0 %562
      %564 = vrot.lane.b32.xlu0 %v491, 16
      %v565 = vpop.permute.xlu0 %564
      %566 = vrot.lane.b32.xlu0 %v492, 16
      %v567 = vpop.permute.xlu0 %566
      %568 = vrot.lane.b32.xlu0 %v493, 16
      %v569 = vpop.permute.xlu0 %568
      %570 = vrot.lane.b32.xlu0 %v494, 16
      %v571 = vpop.permute.xlu0 %570
      %572 = vrot.lane.b32.xlu0 %v495, 16
      %v573 = vpop.permute.xlu0 %572
      %574 = vrot.lane.b32.xlu0 %v496, 16
      %v575 = vpop.permute.xlu0 %574
      %576 = vrot.lane.b32.xlu0 %v497, 16
      %v577 = vpop.permute.xlu0 %576
      %578 = vrot.lane.b32.xlu0 %v498, 16
      %v579 = vpop.permute.xlu0 %578
      %580 = vrot.lane.b32.xlu0 %v499, 16
      %v581 = vpop.permute.xlu0 %580
      %582 = vrot.lane.b32.xlu0 %v500, 16
      %v583 = vpop.permute.xlu0 %582
      %584 = vrot.lane.b32.xlu0 %v501, 16
      %v585 = vpop.permute.xlu0 %584
      %586 = vrot.lane.b32.xlu0 %v502, 16
      %v587 = vpop.permute.xlu0 %586
      %588 = vrot.lane.b32.xlu0 %v503, 16
      %v589 = vpop.permute.xlu0 %588
      %590 = vrot.lane.b32.xlu0 %v504, 16
      %v591 = vpop.permute.xlu0 %590
      %592 = vrot.lane.b32.xlu0 %v505, 16
      %v593 = vpop.permute.xlu0 %592
      %594 = vrot.lane.b32.xlu0 %v506, 16
      %v595 = vpop.permute.xlu0 %594
      %596 = vrot.lane.b32.xlu0 %v507, 16
      %v597 = vpop.permute.xlu0 %596
      %598 = vrot.lane.b32.xlu0 %v508, 16
      %v599 = vpop.permute.xlu0 %598
      %600 = vrot.lane.b32.xlu0 %v509, 16
      %v601 = vpop.permute.xlu0 %600
      %602 = vrot.lane.b32.xlu0 %v510, 16
      %v603 = vpop.permute.xlu0 %602
      %604 = vrot.lane.b32.xlu0 %v511, 16
      %v605 = vpop.permute.xlu0 %604
      %606 = vrot.lane.b32.xlu0 %v512, 16
      %v607 = vpop.permute.xlu0 %606
      %608 = vrot.lane.b32.xlu0 %v513, 16
      %v609 = vpop.permute.xlu0 %608
      %610 = vrot.lane.b32.xlu0 %v514, 16
      %v611 = vpop.permute.xlu0 %610
      %612 = vrot.lane.b32.xlu0 %v515, 16
      %v613 = vpop.permute.xlu0 %612
      %614 = vrot.lane.b32.xlu0 %v516, 16
      %v615 = vpop.permute.xlu0 %614
      %616 = vrot.lane.b32.xlu0 %v517, 16
      %v617 = vpop.permute.xlu0 %616
      %618 = vrot.lane.b32.xlu0 %v518, 16
      %v619 = vpop.permute.xlu0 %618
      %620 = vrot.lane.b32.xlu0 %v519, 16
      %v621 = vpop.permute.xlu0 %620
      %622 = vrot.lane.b32.xlu0 %v520, 16
      %v623 = vpop.permute.xlu0 %622
      %624 = vrot.lane.b32.xlu0 %v521, 16
      %v625 = vpop.permute.xlu0 %624
      %626 = vrot.lane.b32.xlu0 %v522, 16
      %v627 = vpop.permute.xlu0 %626
      %628 = vrot.lane.b32.xlu0 %v523, 16
      %v629 = vpop.permute.xlu0 %628
      %630 = vrot.lane.b32.xlu0 %v524, 16
      %v631 = vpop.permute.xlu0 %630
      %632 = vrot.lane.b32.xlu0 %v525, 16
      %v633 = vpop.permute.xlu0 %632
      %vm670 = vcmask 195712
      %671 = vst.msk [vmem:[#allocation2] sm:$0xff] %vm670, %v563
      %672 = vst.msk [vmem:[#allocation2 + $0x8] sm:$0xff] %vm670, %v565
      %673 = vst.msk [vmem:[#allocation2 + $0x10] sm:$0xff] %vm670, %v567
      %674 = vst.msk [vmem:[#allocation2 + $0x18] sm:$0xff] %vm670, %v569
      %675 = vst.msk [vmem:[#allocation2 + $0x20] sm:$0xff] %vm670, %v571
      %676 = vst.msk [vmem:[#allocation2 + $0x28] sm:$0xff] %vm670, %v573
      %677 = vst.msk [vmem:[#allocation2 + $0x30] sm:$0xff] %vm670, %v575
      %678 = vst.msk [vmem:[#allocation2 + $0x38] sm:$0xff] %vm670, %v577
      %679 = vst.msk [vmem:[#allocation2 + $0x40] sm:$0xff] %vm670, %v579
      %680 = vst.msk [vmem:[#allocation2 + $0x48] sm:$0xff] %vm670, %v581
      %681 = vst.msk [vmem:[#allocation2 + $0x50] sm:$0xff] %vm670, %v583
      %682 = vst.msk [vmem:[#allocation2 + $0x58] sm:$0xff] %vm670, %v585
      %683 = vst.msk [vmem:[#allocation2 + $0x60] sm:$0xff] %vm670, %v587
      %684 = vst.msk [vmem:[#allocation2 + $0x68] sm:$0xff] %vm670, %v589
      %685 = vst.msk [vmem:[#allocation2 + $0x70] sm:$0xff] %vm670, %v591
      %686 = vst.msk [vmem:[#allocation2 + $0x78] sm:$0xff] %vm670, %v593
      %687 = vst.msk [vmem:[#allocation2 + $0x80] sm:$0xff] %vm670, %v595
      %688 = vst.msk [vmem:[#allocation2 + $0x88] sm:$0xff] %vm670, %v597
      %689 = vst.msk [vmem:[#allocation2 + $0x90] sm:$0xff] %vm670, %v599
      %690 = vst.msk [vmem:[#allocation2 + $0x98] sm:$0xff] %vm670, %v601
      %691 = vst.msk [vmem:[#allocation2 + $0xa0] sm:$0xff] %vm670, %v603
      %692 = vst.msk [vmem:[#allocation2 + $0xa8] sm:$0xff] %vm670, %v605
      %693 = vst.msk [vmem:[#allocation2 + $0xb0] sm:$0xff] %vm670, %v607
      %694 = vst.msk [vmem:[#allocation2 + $0xb8] sm:$0xff] %vm670, %v609
      %695 = vst.msk [vmem:[#allocation2 + $0xc0] sm:$0xff] %vm670, %v611
      %696 = vst.msk [vmem:[#allocation2 + $0xc8] sm:$0xff] %vm670, %v613
      %697 = vst.msk [vmem:[#allocation2 + $0xd0] sm:$0xff] %vm670, %v615
      %698 = vst.msk [vmem:[#allocation2 + $0xd8] sm:$0xff] %vm670, %v617
      %699 = vst.msk [vmem:[#allocation2 + $0xe0] sm:$0xff] %vm670, %v619
      %700 = vst.msk [vmem:[#allocation2 + $0xe8] sm:$0xff] %vm670, %v621
      %701 = vst.msk [vmem:[#allocation2 + $0xf0] sm:$0xff] %vm670, %v623
      %702 = vst.msk [vmem:[#allocation2 + $0xf8] sm:$0xff] %vm670, %v625
      %703 = vst.msk [vmem:[#allocation2 + $0x100] sm:$0xff] %vm670, %v627
      %704 = vst.msk [vmem:[#allocation2 + $0x108] sm:$0xff] %vm670, %v629
      %705 = vst.msk [vmem:[#allocation2 + $0x110] sm:$0xff] %vm670, %v631
      %706 = vst.msk [vmem:[#allocation2 + $0x118] sm:$0xff] %vm670, %v633
      %s707 = sadd.s32 %s194, 18
      %s708 = scalar_lea.vmem %s183, %s707
      %v709 = vld [vmem:[%s708] sm:$0xff]
      %v710 = vld [vmem:[%s708 + $0x8] sm:$0xff]
      %v711 = vld [vmem:[%s708 + $0x10] sm:$0xff]
      %v712 = vld [vmem:[%s708 + $0x18] sm:$0xff]
      %v713 = vld [vmem:[%s708 + $0x20] sm:$0xff]
      %v714 = vld [vmem:[%s708 + $0x28] sm:$0xff]
      %v715 = vld [vmem:[%s708 + $0x30] sm:$0xff]
      %v716 = vld [vmem:[%s708 + $0x38] sm:$0xff]
      %v717 = vld [vmem:[%s708 + $0x40] sm:$0xff]
      %v718 = vld [vmem:[%s708 + $0x48] sm:$0xff]
      %v719 = vld [vmem:[%s708 + $0x50] sm:$0xff]
      %v720 = vld [vmem:[%s708 + $0x58] sm:$0xff]
      %v721 = vld [vmem:[%s708 + $0x60] sm:$0xff]
      %v722 = vld [vmem:[%s708 + $0x68] sm:$0xff]
      %v723 = vld [vmem:[%s708 + $0x70] sm:$0xff]
      %v724 = vld [vmem:[%s708 + $0x78] sm:$0xff]
      %v725 = vld [vmem:[%s708 + $0x80] sm:$0xff]
      %v726 = vld [vmem:[%s708 + $0x88] sm:$0xff]
      %v727 = vld [vmem:[%s708 + $0x90] sm:$0xff]
      %v728 = vld [vmem:[%s708 + $0x98] sm:$0xff]
      %v729 = vld [vmem:[%s708 + $0xa0] sm:$0xff]
      %v730 = vld [vmem:[%s708 + $0xa8] sm:$0xff]
      %v731 = vld [vmem:[%s708 + $0xb0] sm:$0xff]
      %v732 = vld [vmem:[%s708 + $0xb8] sm:$0xff]
      %v733 = vld [vmem:[%s708 + $0xc0] sm:$0xff]
      %v734 = vld [vmem:[%s708 + $0xc8] sm:$0xff]
      %v735 = vld [vmem:[%s708 + $0xd0] sm:$0xff]
      %v736 = vld [vmem:[%s708 + $0xd8] sm:$0xff]
      %v737 = vld [vmem:[%s708 + $0xe0] sm:$0xff]
      %v738 = vld [vmem:[%s708 + $0xe8] sm:$0xff]
      %v739 = vld [vmem:[%s708 + $0xf0] sm:$0xff]
      %v740 = vld [vmem:[%s708 + $0xf8] sm:$0xff]
      %v741 = vld [vmem:[%s708 + $0x100] sm:$0xff]
      %v742 = vld [vmem:[%s708 + $0x108] sm:$0xff]
      %v743 = vld [vmem:[%s708 + $0x110] sm:$0xff]
      %v744 = vld [vmem:[%s708 + $0x118] sm:$0xff]
      %781 = vrot.lane.b32.xlu0 %v709, 24
      %v782 = vpop.permute.xlu0 %781
      %783 = vrot.lane.b32.xlu0 %v710, 24
      %v784 = vpop.permute.xlu0 %783
      %785 = vrot.lane.b32.xlu0 %v711, 24
      %v786 = vpop.permute.xlu0 %785
      %787 = vrot.lane.b32.xlu0 %v712, 24
      %v788 = vpop.permute.xlu0 %787
      %789 = vrot.lane.b32.xlu0 %v713, 24
      %v790 = vpop.permute.xlu0 %789
      %791 = vrot.lane.b32.xlu0 %v714, 24
      %v792 = vpop.permute.xlu0 %791
      %793 = vrot.lane.b32.xlu0 %v715, 24
      %v794 = vpop.permute.xlu0 %793
      %795 = vrot.lane.b32.xlu0 %v716, 24
      %v796 = vpop.permute.xlu0 %795
      %797 = vrot.lane.b32.xlu0 %v717, 24
      %v798 = vpop.permute.xlu0 %797
      %799 = vrot.lane.b32.xlu0 %v718, 24
      %v800 = vpop.permute.xlu0 %799
      %801 = vrot.lane.b32.xlu0 %v719, 24
      %v802 = vpop.permute.xlu0 %801
      %803 = vrot.lane.b32.xlu0 %v720, 24
      %v804 = vpop.permute.xlu0 %803
      %805 = vrot.lane.b32.xlu0 %v721, 24
      %v806 = vpop.permute.xlu0 %805
      %807 = vrot.lane.b32.xlu0 %v722, 24
      %v808 = vpop.permute.xlu0 %807
      %809 = vrot.lane.b32.xlu0 %v723, 24
      %v810 = vpop.permute.xlu0 %809
      %811 = vrot.lane.b32.xlu0 %v724, 24
      %v812 = vpop.permute.xlu0 %811
      %813 = vrot.lane.b32.xlu0 %v725, 24
      %v814 = vpop.permute.xlu0 %813
      %815 = vrot.lane.b32.xlu0 %v726, 24
      %v816 = vpop.permute.xlu0 %815
      %817 = vrot.lane.b32.xlu0 %v727, 24
      %v818 = vpop.permute.xlu0 %817
      %819 = vrot.lane.b32.xlu0 %v728, 24
      %v820 = vpop.permute.xlu0 %819
      %821 = vrot.lane.b32.xlu0 %v729, 24
      %v822 = vpop.permute.xlu0 %821
      %823 = vrot.lane.b32.xlu0 %v730, 24
      %v824 = vpop.permute.xlu0 %823
      %825 = vrot.lane.b32.xlu0 %v731, 24
      %v826 = vpop.permute.xlu0 %825
      %827 = vrot.lane.b32.xlu0 %v732, 24
      %v828 = vpop.permute.xlu0 %827
      %829 = vrot.lane.b32.xlu0 %v733, 24
      %v830 = vpop.permute.xlu0 %829
      %831 = vrot.lane.b32.xlu0 %v734, 24
      %v832 = vpop.permute.xlu0 %831
      %833 = vrot.lane.b32.xlu0 %v735, 24
      %v834 = vpop.permute.xlu0 %833
      %835 = vrot.lane.b32.xlu0 %v736, 24
      %v836 = vpop.permute.xlu0 %835
      %837 = vrot.lane.b32.xlu0 %v737, 24
      %v838 = vpop.permute.xlu0 %837
      %839 = vrot.lane.b32.xlu0 %v738, 24
      %v840 = vpop.permute.xlu0 %839
      %841 = vrot.lane.b32.xlu0 %v739, 24
      %v842 = vpop.permute.xlu0 %841
      %843 = vrot.lane.b32.xlu0 %v740, 24
      %v844 = vpop.permute.xlu0 %843
      %845 = vrot.lane.b32.xlu0 %v741, 24
      %v846 = vpop.permute.xlu0 %845
      %847 = vrot.lane.b32.xlu0 %v742, 24
      %v848 = vpop.permute.xlu0 %847
      %849 = vrot.lane.b32.xlu0 %v743, 24
      %v850 = vpop.permute.xlu0 %849
      %851 = vrot.lane.b32.xlu0 %v744, 24
      %v852 = vpop.permute.xlu0 %851
      %vm889 = vcmask 261312
      %890 = vst.msk [vmem:[#allocation2] sm:$0xff] %vm889, %v782
      %891 = vst.msk [vmem:[#allocation2 + $0x8] sm:$0xff] %vm889, %v784
      %892 = vst.msk [vmem:[#allocation2 + $0x10] sm:$0xff] %vm889, %v786
      %893 = vst.msk [vmem:[#allocation2 + $0x18] sm:$0xff] %vm889, %v788
      %894 = vst.msk [vmem:[#allocation2 + $0x20] sm:$0xff] %vm889, %v790
      %895 = vst.msk [vmem:[#allocation2 + $0x28] sm:$0xff] %vm889, %v792
      %896 = vst.msk [vmem:[#allocation2 + $0x30] sm:$0xff] %vm889, %v794
      %897 = vst.msk [vmem:[#allocation2 + $0x38] sm:$0xff] %vm889, %v796
      %898 = vst.msk [vmem:[#allocation2 + $0x40] sm:$0xff] %vm889, %v798
      %899 = vst.msk [vmem:[#allocation2 + $0x48] sm:$0xff] %vm889, %v800
      %900 = vst.msk [vmem:[#allocation2 + $0x50] sm:$0xff] %vm889, %v802
      %901 = vst.msk [vmem:[#allocation2 + $0x58] sm:$0xff] %vm889, %v804
      %902 = vst.msk [vmem:[#allocation2 + $0x60] sm:$0xff] %vm889, %v806
      %903 = vst.msk [vmem:[#allocation2 + $0x68] sm:$0xff] %vm889, %v808
      %904 = vst.msk [vmem:[#allocation2 + $0x70] sm:$0xff] %vm889, %v810
      %905 = vst.msk [vmem:[#allocation2 + $0x78] sm:$0xff] %vm889, %v812
      %906 = vst.msk [vmem:[#allocation2 + $0x80] sm:$0xff] %vm889, %v814
      %907 = vst.msk [vmem:[#allocation2 + $0x88] sm:$0xff] %vm889, %v816
      %908 = vst.msk [vmem:[#allocation2 + $0x90] sm:$0xff] %vm889, %v818
      %909 = vst.msk [vmem:[#allocation2 + $0x98] sm:$0xff] %vm889, %v820
      %910 = vst.msk [vmem:[#allocation2 + $0xa0] sm:$0xff] %vm889, %v822
      %911 = vst.msk [vmem:[#allocation2 + $0xa8] sm:$0xff] %vm889, %v824
      %912 = vst.msk [vmem:[#allocation2 + $0xb0] sm:$0xff] %vm889, %v826
      %913 = vst.msk [vmem:[#allocation2 + $0xb8] sm:$0xff] %vm889, %v828
      %914 = vst.msk [vmem:[#allocation2 + $0xc0] sm:$0xff] %vm889, %v830
      %915 = vst.msk [vmem:[#allocation2 + $0xc8] sm:$0xff] %vm889, %v832
      %916 = vst.msk [vmem:[#allocation2 + $0xd0] sm:$0xff] %vm889, %v834
      %917 = vst.msk [vmem:[#allocation2 + $0xd8] sm:$0xff] %vm889, %v836
      %918 = vst.msk [vmem:[#allocation2 + $0xe0] sm:$0xff] %vm889, %v838
      %919 = vst.msk [vmem:[#allocation2 + $0xe8] sm:$0xff] %vm889, %v840
      %920 = vst.msk [vmem:[#allocation2 + $0xf0] sm:$0xff] %vm889, %v842
      %921 = vst.msk [vmem:[#allocation2 + $0xf8] sm:$0xff] %vm889, %v844
      %922 = vst.msk [vmem:[#allocation2 + $0x100] sm:$0xff] %vm889, %v846
      %923 = vst.msk [vmem:[#allocation2 + $0x108] sm:$0xff] %vm889, %v848
      %924 = vst.msk [vmem:[#allocation2 + $0x110] sm:$0xff] %vm889, %v850
      %925 = vst.msk [vmem:[#allocation2 + $0x118] sm:$0xff] %vm889, %v852
      %s926 = sadd.s32 %s194, 19
      %s927 = scalar_lea.vmem %s183, %s926
      %v928 = vld [vmem:[%s927] sm:$0xff]
      %v929 = vld [vmem:[%s927 + $0x8] sm:$0xff]
      %v930 = vld [vmem:[%s927 + $0x10] sm:$0xff]
      %v931 = vld [vmem:[%s927 + $0x18] sm:$0xff]
      %v932 = vld [vmem:[%s927 + $0x20] sm:$0xff]
      %v933 = vld [vmem:[%s927 + $0x28] sm:$0xff]
      %v934 = vld [vmem:[%s927 + $0x30] sm:$0xff]
      %v935 = vld [vmem:[%s927 + $0x38] sm:$0xff]
      %v936 = vld [vmem:[%s927 + $0x40] sm:$0xff]
      %v937 = vld [vmem:[%s927 + $0x48] sm:$0xff]
      %v938 = vld [vmem:[%s927 + $0x50] sm:$0xff]
      %v939 = vld [vmem:[%s927 + $0x58] sm:$0xff]
      %v940 = vld [vmem:[%s927 + $0x60] sm:$0xff]
      %v941 = vld [vmem:[%s927 + $0x68] sm:$0xff]
      %v942 = vld [vmem:[%s927 + $0x70] sm:$0xff]
      %v943 = vld [vmem:[%s927 + $0x78] sm:$0xff]
      %v944 = vld [vmem:[%s927 + $0x80] sm:$0xff]
      %v945 = vld [vmem:[%s927 + $0x88] sm:$0xff]
      %v946 = vld [vmem:[%s927 + $0x90] sm:$0xff]
      %v947 = vld [vmem:[%s927 + $0x98] sm:$0xff]
      %v948 = vld [vmem:[%s927 + $0xa0] sm:$0xff]
      %v949 = vld [vmem:[%s927 + $0xa8] sm:$0xff]
      %v950 = vld [vmem:[%s927 + $0xb0] sm:$0xff]
      %v951 = vld [vmem:[%s927 + $0xb8] sm:$0xff]
      %v952 = vld [vmem:[%s927 + $0xc0] sm:$0xff]
      %v953 = vld [vmem:[%s927 + $0xc8] sm:$0xff]
      %v954 = vld [vmem:[%s927 + $0xd0] sm:$0xff]
      %v955 = vld [vmem:[%s927 + $0xd8] sm:$0xff]
      %v956 = vld [vmem:[%s927 + $0xe0] sm:$0xff]
      %v957 = vld [vmem:[%s927 + $0xe8] sm:$0xff]
      %v958 = vld [vmem:[%s927 + $0xf0] sm:$0xff]
      %v959 = vld [vmem:[%s927 + $0xf8] sm:$0xff]
      %v960 = vld [vmem:[%s927 + $0x100] sm:$0xff]
      %v961 = vld [vmem:[%s927 + $0x108] sm:$0xff]
      %v962 = vld [vmem:[%s927 + $0x110] sm:$0xff]
      %v963 = vld [vmem:[%s927 + $0x118] sm:$0xff]
      %1000 = vrot.lane.b32.xlu0 %v928, 32
      %v1001 = vpop.permute.xlu0 %1000
      %1002 = vrot.lane.b32.xlu0 %v929, 32
      %v1003 = vpop.permute.xlu0 %1002
      %1004 = vrot.lane.b32.xlu0 %v930, 32
      %v1005 = vpop.permute.xlu0 %1004
      %1006 = vrot.lane.b32.xlu0 %v931, 32
      %v1007 = vpop.permute.xlu0 %1006
      %1008 = vrot.lane.b32.xlu0 %v932, 32
      %v1009 = vpop.permute.xlu0 %1008
      %1010 = vrot.lane.b32.xlu0 %v933, 32
      %v1011 = vpop.permute.xlu0 %1010
      %1012 = vrot.lane.b32.xlu0 %v934, 32
      %v1013 = vpop.permute.xlu0 %1012
      %1014 = vrot.lane.b32.xlu0 %v935, 32
      %v1015 = vpop.permute.xlu0 %1014
      %1016 = vrot.lane.b32.xlu0 %v936, 32
      %v1017 = vpop.permute.xlu0 %1016
      %1018 = vrot.lane.b32.xlu0 %v937, 32
      %v1019 = vpop.permute.xlu0 %1018
      %1020 = vrot.lane.b32.xlu0 %v938, 32
      %v1021 = vpop.permute.xlu0 %1020
      %1022 = vrot.lane.b32.xlu0 %v939, 32
      %v1023 = vpop.permute.xlu0 %1022
      %1024 = vrot.lane.b32.xlu0 %v940, 32
      %v1025 = vpop.permute.xlu0 %1024
      %1026 = vrot.lane.b32.xlu0 %v941, 32
      %v1027 = vpop.permute.xlu0 %1026
      %1028 = vrot.lane.b32.xlu0 %v942, 32
      %v1029 = vpop.permute.xlu0 %1028
      %1030 = vrot.lane.b32.xlu0 %v943, 32
      %v1031 = vpop.permute.xlu0 %1030
      %1032 = vrot.lane.b32.xlu0 %v944, 32
      %v1033 = vpop.permute.xlu0 %1032
      %1034 = vrot.lane.b32.xlu0 %v945, 32
      %v1035 = vpop.permute.xlu0 %1034
      %1036 = vrot.lane.b32.xlu0 %v946, 32
      %v1037 = vpop.permute.xlu0 %1036
      %1038 = vrot.lane.b32.xlu0 %v947, 32
      %v1039 = vpop.permute.xlu0 %1038
      %1040 = vrot.lane.b32.xlu0 %v948, 32
      %v1041 = vpop.permute.xlu0 %1040
      %1042 = vrot.lane.b32.xlu0 %v949, 32
      %v1043 = vpop.permute.xlu0 %1042
      %1044 = vrot.lane.b32.xlu0 %v950, 32
      %v1045 = vpop.permute.xlu0 %1044
      %1046 = vrot.lane.b32.xlu0 %v951, 32
      %v1047 = vpop.permute.xlu0 %1046
      %1048 = vrot.lane.b32.xlu0 %v952, 32
      %v1049 = vpop.permute.xlu0 %1048
      %1050 = vrot.lane.b32.xlu0 %v953, 32
      %v1051 = vpop.permute.xlu0 %1050
      %1052 = vrot.lane.b32.xlu0 %v954, 32
      %v1053 = vpop.permute.xlu0 %1052
      %1054 = vrot.lane.b32.xlu0 %v955, 32
      %v1055 = vpop.permute.xlu0 %1054
      %1056 = vrot.lane.b32.xlu0 %v956, 32
      %v1057 = vpop.permute.xlu0 %1056
      %1058 = vrot.lane.b32.xlu0 %v957, 32
      %v1059 = vpop.permute.xlu0 %1058
      %1060 = vrot.lane.b32.xlu0 %v958, 32
      %v1061 = vpop.permute.xlu0 %1060
      %1062 = vrot.lane.b32.xlu0 %v959, 32
      %v1063 = vpop.permute.xlu0 %1062
      %1064 = vrot.lane.b32.xlu0 %v960, 32
      %v1065 = vpop.permute.xlu0 %1064
      %1066 = vrot.lane.b32.xlu0 %v961, 32
      %v1067 = vpop.permute.xlu0 %1066
      %1068 = vrot.lane.b32.xlu0 %v962, 32
      %v1069 = vpop.permute.xlu0 %1068
      %1070 = vrot.lane.b32.xlu0 %v963, 32
      %v1071 = vpop.permute.xlu0 %1070
      %vm1108 = vcmask 326912
      %1109 = vst.msk [vmem:[#allocation2] sm:$0xff] %vm1108, %v1001
      %1110 = vst.msk [vmem:[#allocation2 + $0x8] sm:$0xff] %vm1108, %v1003
      %1111 = vst.msk [vmem:[#allocation2 + $0x10] sm:$0xff] %vm1108, %v1005
      %1112 = vst.msk [vmem:[#allocation2 + $0x18] sm:$0xff] %vm1108, %v1007
      %1113 = vst.msk [vmem:[#allocation2 + $0x20] sm:$0xff] %vm1108, %v1009
      %1114 = vst.msk [vmem:[#allocation2 + $0x28] sm:$0xff] %vm1108, %v1011
      %1115 = vst.msk [vmem:[#allocation2 + $0x30] sm:$0xff] %vm1108, %v1013
      %1116 = vst.msk [vmem:[#allocation2 + $0x38] sm:$0xff] %vm1108, %v1015
      %1117 = vst.msk [vmem:[#allocation2 + $0x40] sm:$0xff] %vm1108, %v1017
      %1118 = vst.msk [vmem:[#allocation2 + $0x48] sm:$0xff] %vm1108, %v1019
      %1119 = vst.msk [vmem:[#allocation2 + $0x50] sm:$0xff] %vm1108, %v1021
      %1120 = vst.msk [vmem:[#allocation2 + $0x58] sm:$0xff] %vm1108, %v1023
      %1121 = vst.msk [vmem:[#allocation2 + $0x60] sm:$0xff] %vm1108, %v1025
      %1122 = vst.msk [vmem:[#allocation2 + $0x68] sm:$0xff] %vm1108, %v1027
      %1123 = vst.msk [vmem:[#allocation2 + $0x70] sm:$0xff] %vm1108, %v1029
      %1124 = vst.msk [vmem:[#allocation2 + $0x78] sm:$0xff] %vm1108, %v1031
      %1125 = vst.msk [vmem:[#allocation2 + $0x80] sm:$0xff] %vm1108, %v1033
      %1126 = vst.msk [vmem:[#allocation2 + $0x88] sm:$0xff] %vm1108, %v1035
      %1127 = vst.msk [vmem:[#allocation2 + $0x90] sm:$0xff] %vm1108, %v1037
      %1128 = vst.msk [vmem:[#allocation2 + $0x98] sm:$0xff] %vm1108, %v1039
      %1129 = vst.msk [vmem:[#allocation2 + $0xa0] sm:$0xff] %vm1108, %v1041
      %1130 = vst.msk [vmem:[#allocation2 + $0xa8] sm:$0xff] %vm1108, %v1043
      %1131 = vst.msk [vmem:[#allocation2 + $0xb0] sm:$0xff] %vm1108, %v1045
      %1132 = vst.msk [vmem:[#allocation2 + $0xb8] sm:$0xff] %vm1108, %v1047
      %1133 = vst.msk [vmem:[#allocation2 + $0xc0] sm:$0xff] %vm1108, %v1049
      %1134 = vst.msk [vmem:[#allocation2 + $0xc8] sm:$0xff] %vm1108, %v1051
      %1135 = vst.msk [vmem:[#allocation2 + $0xd0] sm:$0xff] %vm1108, %v1053
      %1136 = vst.msk [vmem:[#allocation2 + $0xd8] sm:$0xff] %vm1108, %v1055
      %1137 = vst.msk [vmem:[#allocation2 + $0xe0] sm:$0xff] %vm1108, %v1057
      %1138 = vst.msk [vmem:[#allocation2 + $0xe8] sm:$0xff] %vm1108, %v1059
      %1139 = vst.msk [vmem:[#allocation2 + $0xf0] sm:$0xff] %vm1108, %v1061
      %1140 = vst.msk [vmem:[#allocation2 + $0xf8] sm:$0xff] %vm1108, %v1063
      %1141 = vst.msk [vmem:[#allocation2 + $0x100] sm:$0xff] %vm1108, %v1065
      %1142 = vst.msk [vmem:[#allocation2 + $0x108] sm:$0xff] %vm1108, %v1067
      %1143 = vst.msk [vmem:[#allocation2 + $0x110] sm:$0xff] %vm1108, %v1069
      %1144 = vst.msk [vmem:[#allocation2 + $0x118] sm:$0xff] %vm1108, %v1071
      %s1145 = sadd.s32 %s194, 20
      %s1146 = scalar_lea.vmem %s183, %s1145
      %v1147 = vld [vmem:[%s1146] sm:$0xff]
      %v1148 = vld [vmem:[%s1146 + $0x8] sm:$0xff]
      %v1149 = vld [vmem:[%s1146 + $0x10] sm:$0xff]
      %v1150 = vld [vmem:[%s1146 + $0x18] sm:$0xff]
      %v1151 = vld [vmem:[%s1146 + $0x20] sm:$0xff]
      %v1152 = vld [vmem:[%s1146 + $0x28] sm:$0xff]
      %v1153 = vld [vmem:[%s1146 + $0x30] sm:$0xff]
      %v1154 = vld [vmem:[%s1146 + $0x38] sm:$0xff]
      %v1155 = vld [vmem:[%s1146 + $0x40] sm:$0xff]
      %v1156 = vld [vmem:[%s1146 + $0x48] sm:$0xff]
      %v1157 = vld [vmem:[%s1146 + $0x50] sm:$0xff]
      %v1158 = vld [vmem:[%s1146 + $0x58] sm:$0xff]
      %v1159 = vld [vmem:[%s1146 + $0x60] sm:$0xff]
      %v1160 = vld [vmem:[%s1146 + $0x68] sm:$0xff]
      %v1161 = vld [vmem:[%s1146 + $0x70] sm:$0xff]
      %v1162 = vld [vmem:[%s1146 + $0x78] sm:$0xff]
      %v1163 = vld [vmem:[%s1146 + $0x80] sm:$0xff]
      %v1164 = vld [vmem:[%s1146 + $0x88] sm:$0xff]
      %v1165 = vld [vmem:[%s1146 + $0x90] sm:$0xff]
      %v1166 = vld [vmem:[%s1146 + $0x98] sm:$0xff]
      %v1167 = vld [vmem:[%s1146 + $0xa0] sm:$0xff]
      %v1168 = vld [vmem:[%s1146 + $0xa8] sm:$0xff]
      %v1169 = vld [vmem:[%s1146 + $0xb0] sm:$0xff]
      %v1170 = vld [vmem:[%s1146 + $0xb8] sm:$0xff]
      %v1171 = vld [vmem:[%s1146 + $0xc0] sm:$0xff]
      %v1172 = vld [vmem:[%s1146 + $0xc8] sm:$0xff]
      %v1173 = vld [vmem:[%s1146 + $0xd0] sm:$0xff]
      %v1174 = vld [vmem:[%s1146 + $0xd8] sm:$0xff]
      %v1175 = vld [vmem:[%s1146 + $0xe0] sm:$0xff]
      %v1176 = vld [vmem:[%s1146 + $0xe8] sm:$0xff]
      %v1177 = vld [vmem:[%s1146 + $0xf0] sm:$0xff]
      %v1178 = vld [vmem:[%s1146 + $0xf8] sm:$0xff]
      %v1179 = vld [vmem:[%s1146 + $0x100] sm:$0xff]
      %v1180 = vld [vmem:[%s1146 + $0x108] sm:$0xff]
      %v1181 = vld [vmem:[%s1146 + $0x110] sm:$0xff]
      %v1182 = vld [vmem:[%s1146 + $0x118] sm:$0xff]
      %1219 = vrot.lane.b32.xlu0 %v1147, 40
      %v1220 = vpop.permute.xlu0 %1219
      %1221 = vrot.lane.b32.xlu0 %v1148, 40
      %v1222 = vpop.permute.xlu0 %1221
      %1223 = vrot.lane.b32.xlu0 %v1149, 40
      %v1224 = vpop.permute.xlu0 %1223
      %1225 = vrot.lane.b32.xlu0 %v1150, 40
      %v1226 = vpop.permute.xlu0 %1225
      %1227 = vrot.lane.b32.xlu0 %v1151, 40
      %v1228 = vpop.permute.xlu0 %1227
      %1229 = vrot.lane.b32.xlu0 %v1152, 40
      %v1230 = vpop.permute.xlu0 %1229
      %1231 = vrot.lane.b32.xlu0 %v1153, 40
      %v1232 = vpop.permute.xlu0 %1231
      %1233 = vrot.lane.b32.xlu0 %v1154, 40
      %v1234 = vpop.permute.xlu0 %1233
      %1235 = vrot.lane.b32.xlu0 %v1155, 40
      %v1236 = vpop.permute.xlu0 %1235
      %1237 = vrot.lane.b32.xlu0 %v1156, 40
      %v1238 = vpop.permute.xlu0 %1237
      %1239 = vrot.lane.b32.xlu0 %v1157, 40
      %v1240 = vpop.permute.xlu0 %1239
      %1241 = vrot.lane.b32.xlu0 %v1158, 40
      %v1242 = vpop.permute.xlu0 %1241
      %1243 = vrot.lane.b32.xlu0 %v1159, 40
      %v1244 = vpop.permute.xlu0 %1243
      %1245 = vrot.lane.b32.xlu0 %v1160, 40
      %v1246 = vpop.permute.xlu0 %1245
      %1247 = vrot.lane.b32.xlu0 %v1161, 40
      %v1248 = vpop.permute.xlu0 %1247
      %1249 = vrot.lane.b32.xlu0 %v1162, 40
      %v1250 = vpop.permute.xlu0 %1249
      %1251 = vrot.lane.b32.xlu0 %v1163, 40
      %v1252 = vpop.permute.xlu0 %1251
      %1253 = vrot.lane.b32.xlu0 %v1164, 40
      %v1254 = vpop.permute.xlu0 %1253
      %1255 = vrot.lane.b32.xlu0 %v1165, 40
      %v1256 = vpop.permute.xlu0 %1255
      %1257 = vrot.lane.b32.xlu0 %v1166, 40
      %v1258 = vpop.permute.xlu0 %1257
      %1259 = vrot.lane.b32.xlu0 %v1167, 40
      %v1260 = vpop.permute.xlu0 %1259
      %1261 = vrot.lane.b32.xlu0 %v1168, 40
      %v1262 = vpop.permute.xlu0 %1261
      %1263 = vrot.lane.b32.xlu0 %v1169, 40
      %v1264 = vpop.permute.xlu0 %1263
      %1265 = vrot.lane.b32.xlu0 %v1170, 40
      %v1266 = vpop.permute.xlu0 %1265
      %1267 = vrot.lane.b32.xlu0 %v1171, 40
      %v1268 = vpop.permute.xlu0 %1267
      %1269 = vrot.lane.b32.xlu0 %v1172, 40
      %v1270 = vpop.permute.xlu0 %1269
      %1271 = vrot.lane.b32.xlu0 %v1173, 40
      %v1272 = vpop.permute.xlu0 %1271
      %1273 = vrot.lane.b32.xlu0 %v1174, 40
      %v1274 = vpop.permute.xlu0 %1273
      %1275 = vrot.lane.b32.xlu0 %v1175, 40
      %v1276 = vpop.permute.xlu0 %1275
      %1277 = vrot.lane.b32.xlu0 %v1176, 40
      %v1278 = vpop.permute.xlu0 %1277
      %1279 = vrot.lane.b32.xlu0 %v1177, 40
      %v1280 = vpop.permute.xlu0 %1279
      %1281 = vrot.lane.b32.xlu0 %v1178, 40
      %v1282 = vpop.permute.xlu0 %1281
      %1283 = vrot.lane.b32.xlu0 %v1179, 40
      %v1284 = vpop.permute.xlu0 %1283
      %1285 = vrot.lane.b32.xlu0 %v1180, 40
      %v1286 = vpop.permute.xlu0 %1285
      %1287 = vrot.lane.b32.xlu0 %v1181, 40
      %v1288 = vpop.permute.xlu0 %1287
      %1289 = vrot.lane.b32.xlu0 %v1182, 40
      %v1290 = vpop.permute.xlu0 %1289
      %vm1327 = vcmask 392512
      %1328 = vst.msk [vmem:[#allocation2] sm:$0xff] %vm1327, %v1220
      %1329 = vst.msk [vmem:[#allocation2 + $0x8] sm:$0xff] %vm1327, %v1222
      %1330 = vst.msk [vmem:[#allocation2 + $0x10] sm:$0xff] %vm1327, %v1224
      %1331 = vst.msk [vmem:[#allocation2 + $0x18] sm:$0xff] %vm1327, %v1226
      %1332 = vst.msk [vmem:[#allocation2 + $0x20] sm:$0xff] %vm1327, %v1228
      %1333 = vst.msk [vmem:[#allocation2 + $0x28] sm:$0xff] %vm1327, %v1230
      %1334 = vst.msk [vmem:[#allocation2 + $0x30] sm:$0xff] %vm1327, %v1232
      %1335 = vst.msk [vmem:[#allocation2 + $0x38] sm:$0xff] %vm1327, %v1234
      %1336 = vst.msk [vmem:[#allocation2 + $0x40] sm:$0xff] %vm1327, %v1236
      %1337 = vst.msk [vmem:[#allocation2 + $0x48] sm:$0xff] %vm1327, %v1238
      %1338 = vst.msk [vmem:[#allocation2 + $0x50] sm:$0xff] %vm1327, %v1240
      %1339 = vst.msk [vmem:[#allocation2 + $0x58] sm:$0xff] %vm1327, %v1242
      %1340 = vst.msk [vmem:[#allocation2 + $0x60] sm:$0xff] %vm1327, %v1244
      %1341 = vst.msk [vmem:[#allocation2 + $0x68] sm:$0xff] %vm1327, %v1246
      %1342 = vst.msk [vmem:[#allocation2 + $0x70] sm:$0xff] %vm1327, %v1248
      %1343 = vst.msk [vmem:[#allocation2 + $0x78] sm:$0xff] %vm1327, %v1250
      %1344 = vst.msk [vmem:[#allocation2 + $0x80] sm:$0xff] %vm1327, %v1252
      %1345 = vst.msk [vmem:[#allocation2 + $0x88] sm:$0xff] %vm1327, %v1254
      %1346 = vst.msk [vmem:[#allocation2 + $0x90] sm:$0xff] %vm1327, %v1256
      %1347 = vst.msk [vmem:[#allocation2 + $0x98] sm:$0xff] %vm1327, %v1258
      %1348 = vst.msk [vmem:[#allocation2 + $0xa0] sm:$0xff] %vm1327, %v1260
      %1349 = vst.msk [vmem:[#allocation2 + $0xa8] sm:$0xff] %vm1327, %v1262
      %1350 = vst.msk [vmem:[#allocation2 + $0xb0] sm:$0xff] %vm1327, %v1264
      %1351 = vst.msk [vmem:[#allocation2 + $0xb8] sm:$0xff] %vm1327, %v1266
      %1352 = vst.msk [vmem:[#allocation2 + $0xc0] sm:$0xff] %vm1327, %v1268
      %1353 = vst.msk [vmem:[#allocation2 + $0xc8] sm:$0xff] %vm1327, %v1270
      %1354 = vst.msk [vmem:[#allocation2 + $0xd0] sm:$0xff] %vm1327, %v1272
      %1355 = vst.msk [vmem:[#allocation2 + $0xd8] sm:$0xff] %vm1327, %v1274
      %1356 = vst.msk [vmem:[#allocation2 + $0xe0] sm:$0xff] %vm1327, %v1276
      %1357 = vst.msk [vmem:[#allocation2 + $0xe8] sm:$0xff] %vm1327, %v1278
      %1358 = vst.msk [vmem:[#allocation2 + $0xf0] sm:$0xff] %vm1327, %v1280
      %1359 = vst.msk [vmem:[#allocation2 + $0xf8] sm:$0xff] %vm1327, %v1282
      %1360 = vst.msk [vmem:[#allocation2 + $0x100] sm:$0xff] %vm1327, %v1284
      %1361 = vst.msk [vmem:[#allocation2 + $0x108] sm:$0xff] %vm1327, %v1286
      %1362 = vst.msk [vmem:[#allocation2 + $0x110] sm:$0xff] %vm1327, %v1288
      %1363 = vst.msk [vmem:[#allocation2 + $0x118] sm:$0xff] %vm1327, %v1290
      %s1364 = sadd.s32 %s194, 36
      %s1365 = scalar_lea.vmem %s183, %s1364
      %v1366 = vld [vmem:[%s1365] sm:$0xff]
      %v1367 = vld [vmem:[%s1365 + $0x8] sm:$0xff]
      %v1368 = vld [vmem:[%s1365 + $0x10] sm:$0xff]
      %v1369 = vld [vmem:[%s1365 + $0x18] sm:$0xff]
      %v1370 = vld [vmem:[%s1365 + $0x20] sm:$0xff]
      %v1371 = vld [vmem:[%s1365 + $0x28] sm:$0xff]
      %v1372 = vld [vmem:[%s1365 + $0x30] sm:$0xff]
      %v1373 = vld [vmem:[%s1365 + $0x38] sm:$0xff]
      %v1374 = vld [vmem:[%s1365 + $0x40] sm:$0xff]
      %v1375 = vld [vmem:[%s1365 + $0x48] sm:$0xff]
      %v1376 = vld [vmem:[%s1365 + $0x50] sm:$0xff]
      %v1377 = vld [vmem:[%s1365 + $0x58] sm:$0xff]
      %v1378 = vld [vmem:[%s1365 + $0x60] sm:$0xff]
      %v1379 = vld [vmem:[%s1365 + $0x68] sm:$0xff]
      %v1380 = vld [vmem:[%s1365 + $0x70] sm:$0xff]
      %v1381 = vld [vmem:[%s1365 + $0x78] sm:$0xff]
      %v1382 = vld [vmem:[%s1365 + $0x80] sm:$0xff]
      %v1383 = vld [vmem:[%s1365 + $0x88] sm:$0xff]
      %v1384 = vld [vmem:[%s1365 + $0x90] sm:$0xff]
      %v1385 = vld [vmem:[%s1365 + $0x98] sm:$0xff]
      %v1386 = vld [vmem:[%s1365 + $0xa0] sm:$0xff]
      %v1387 = vld [vmem:[%s1365 + $0xa8] sm:$0xff]
      %v1388 = vld [vmem:[%s1365 + $0xb0] sm:$0xff]
      %v1389 = vld [vmem:[%s1365 + $0xb8] sm:$0xff]
      %v1390 = vld [vmem:[%s1365 + $0xc0] sm:$0xff]
      %v1391 = vld [vmem:[%s1365 + $0xc8] sm:$0xff]
      %v1392 = vld [vmem:[%s1365 + $0xd0] sm:$0xff]
      %v1393 = vld [vmem:[%s1365 + $0xd8] sm:$0xff]
      %v1394 = vld [vmem:[%s1365 + $0xe0] sm:$0xff]
      %v1395 = vld [vmem:[%s1365 + $0xe8] sm:$0xff]
      %v1396 = vld [vmem:[%s1365 + $0xf0] sm:$0xff]
      %v1397 = vld [vmem:[%s1365 + $0xf8] sm:$0xff]
      %v1398 = vld [vmem:[%s1365 + $0x100] sm:$0xff]
      %v1399 = vld [vmem:[%s1365 + $0x108] sm:$0xff]
      %v1400 = vld [vmem:[%s1365 + $0x110] sm:$0xff]
      %v1401 = vld [vmem:[%s1365 + $0x118] sm:$0xff]
      %1438 = vrot.lane.b32.xlu0 %v1366, 48
      %v1439 = vpop.permute.xlu0 %1438
      %1440 = vrot.lane.b32.xlu0 %v1367, 48
      %v1441 = vpop.permute.xlu0 %1440
      %1442 = vrot.lane.b32.xlu0 %v1368, 48
      %v1443 = vpop.permute.xlu0 %1442
      %1444 = vrot.lane.b32.xlu0 %v1369, 48
      %v1445 = vpop.permute.xlu0 %1444
      %1446 = vrot.lane.b32.xlu0 %v1370, 48
      %v1447 = vpop.permute.xlu0 %1446
      %1448 = vrot.lane.b32.xlu0 %v1371, 48
      %v1449 = vpop.permute.xlu0 %1448
      %1450 = vrot.lane.b32.xlu0 %v1372, 48
      %v1451 = vpop.permute.xlu0 %1450
      %1452 = vrot.lane.b32.xlu0 %v1373, 48
      %v1453 = vpop.permute.xlu0 %1452
      %1454 = vrot.lane.b32.xlu0 %v1374, 48
      %v1455 = vpop.permute.xlu0 %1454
      %1456 = vrot.lane.b32.xlu0 %v1375, 48
      %v1457 = vpop.permute.xlu0 %1456
      %1458 = vrot.lane.b32.xlu0 %v1376, 48
      %v1459 = vpop.permute.xlu0 %1458
      %1460 = vrot.lane.b32.xlu0 %v1377, 48
      %v1461 = vpop.permute.xlu0 %1460
      %1462 = vrot.lane.b32.xlu0 %v1378, 48
      %v1463 = vpop.permute.xlu0 %1462
      %1464 = vrot.lane.b32.xlu0 %v1379, 48
      %v1465 = vpop.permute.xlu0 %1464
      %1466 = vrot.lane.b32.xlu0 %v1380, 48
      %v1467 = vpop.permute.xlu0 %1466
      %1468 = vrot.lane.b32.xlu0 %v1381, 48
      %v1469 = vpop.permute.xlu0 %1468
      %1470 = vrot.lane.b32.xlu0 %v1382, 48
      %v1471 = vpop.permute.xlu0 %1470
      %1472 = vrot.lane.b32.xlu0 %v1383, 48
      %v1473 = vpop.permute.xlu0 %1472
      %1474 = vrot.lane.b32.xlu0 %v1384, 48
      %v1475 = vpop.permute.xlu0 %1474
      %1476 = vrot.lane.b32.xlu0 %v1385, 48
      %v1477 = vpop.permute.xlu0 %1476
      %1478 = vrot.lane.b32.xlu0 %v1386, 48
      %v1479 = vpop.permute.xlu0 %1478
      %1480 = vrot.lane.b32.xlu0 %v1387, 48
      %v1481 = vpop.permute.xlu0 %1480
      %1482 = vrot.lane.b32.xlu0 %v1388, 48
      %v1483 = vpop.permute.xlu0 %1482
      %1484 = vrot.lane.b32.xlu0 %v1389, 48
      %v1485 = vpop.permute.xlu0 %1484
      %1486 = vrot.lane.b32.xlu0 %v1390, 48
      %v1487 = vpop.permute.xlu0 %1486
      %1488 = vrot.lane.b32.xlu0 %v1391, 48
      %v1489 = vpop.permute.xlu0 %1488
      %1490 = vrot.lane.b32.xlu0 %v1392, 48
      %v1491 = vpop.permute.xlu0 %1490
      %1492 = vrot.lane.b32.xlu0 %v1393, 48
      %v1493 = vpop.permute.xlu0 %1492
      %1494 = vrot.lane.b32.xlu0 %v1394, 48
      %v1495 = vpop.permute.xlu0 %1494
      %1496 = vrot.lane.b32.xlu0 %v1395, 48
      %v1497 = vpop.permute.xlu0 %1496
      %1498 = vrot.lane.b32.xlu0 %v1396, 48
      %v1499 = vpop.permute.xlu0 %1498
      %1500 = vrot.lane.b32.xlu0 %v1397, 48
      %v1501 = vpop.permute.xlu0 %1500
      %1502 = vrot.lane.b32.xlu0 %v1398, 48
      %v1503 = vpop.permute.xlu0 %1502
      %1504 = vrot.lane.b32.xlu0 %v1399, 48
      %v1505 = vpop.permute.xlu0 %1504
      %1506 = vrot.lane.b32.xlu0 %v1400, 48
      %v1507 = vpop.permute.xlu0 %1506
      %1508 = vrot.lane.b32.xlu0 %v1401, 48
      %v1509 = vpop.permute.xlu0 %1508
      %vm1546 = vcmask 458112
      %1547 = vst.msk [vmem:[#allocation2] sm:$0xff] %vm1546, %v1439
      %1548 = vst.msk [vmem:[#allocation2 + $0x8] sm:$0xff] %vm1546, %v1441
      %1549 = vst.msk [vmem:[#allocation2 + $0x10] sm:$0xff] %vm1546, %v1443
      %1550 = vst.msk [vmem:[#allocation2 + $0x18] sm:$0xff] %vm1546, %v1445
      %1551 = vst.msk [vmem:[#allocation2 + $0x20] sm:$0xff] %vm1546, %v1447
      %1552 = vst.msk [vmem:[#allocation2 + $0x28] sm:$0xff] %vm1546, %v1449
      %1553 = vst.msk [vmem:[#allocation2 + $0x30] sm:$0xff] %vm1546, %v1451
      %1554 = vst.msk [vmem:[#allocation2 + $0x38] sm:$0xff] %vm1546, %v1453
      %1555 = vst.msk [vmem:[#allocation2 + $0x40] sm:$0xff] %vm1546, %v1455
      %1556 = vst.msk [vmem:[#allocation2 + $0x48] sm:$0xff] %vm1546, %v1457
      %1557 = vst.msk [vmem:[#allocation2 + $0x50] sm:$0xff] %vm1546, %v1459
      %1558 = vst.msk [vmem:[#allocation2 + $0x58] sm:$0xff] %vm1546, %v1461
      %1559 = vst.msk [vmem:[#allocation2 + $0x60] sm:$0xff] %vm1546, %v1463
      %1560 = vst.msk [vmem:[#allocation2 + $0x68] sm:$0xff] %vm1546, %v1465
      %1561 = vst.msk [vmem:[#allocation2 + $0x70] sm:$0xff] %vm1546, %v1467
      %1562 = vst.msk [vmem:[#allocation2 + $0x78] sm:$0xff] %vm1546, %v1469
      %1563 = vst.msk [vmem:[#allocation2 + $0x80] sm:$0xff] %vm1546, %v1471
      %1564 = vst.msk [vmem:[#allocation2 + $0x88] sm:$0xff] %vm1546, %v1473
      %1565 = vst.msk [vmem:[#allocation2 + $0x90] sm:$0xff] %vm1546, %v1475
      %1566 = vst.msk [vmem:[#allocation2 + $0x98] sm:$0xff] %vm1546, %v1477
      %1567 = vst.msk [vmem:[#allocation2 + $0xa0] sm:$0xff] %vm1546, %v1479
      %1568 = vst.msk [vmem:[#allocation2 + $0xa8] sm:$0xff] %vm1546, %v1481
      %1569 = vst.msk [vmem:[#allocation2 + $0xb0] sm:$0xff] %vm1546, %v1483
      %1570 = vst.msk [vmem:[#allocation2 + $0xb8] sm:$0xff] %vm1546, %v1485
      %1571 = vst.msk [vmem:[#allocation2 + $0xc0] sm:$0xff] %vm1546, %v1487
      %1572 = vst.msk [vmem:[#allocation2 + $0xc8] sm:$0xff] %vm1546, %v1489
      %1573 = vst.msk [vmem:[#allocation2 + $0xd0] sm:$0xff] %vm1546, %v1491
      %1574 = vst.msk [vmem:[#allocation2 + $0xd8] sm:$0xff] %vm1546, %v1493
      %1575 = vst.msk [vmem:[#allocation2 + $0xe0] sm:$0xff] %vm1546, %v1495
      %1576 = vst.msk [vmem:[#allocation2 + $0xe8] sm:$0xff] %vm1546, %v1497
      %1577 = vst.msk [vmem:[#allocation2 + $0xf0] sm:$0xff] %vm1546, %v1499
      %1578 = vst.msk [vmem:[#allocation2 + $0xf8] sm:$0xff] %vm1546, %v1501
      %1579 = vst.msk [vmem:[#allocation2 + $0x100] sm:$0xff] %vm1546, %v1503
      %1580 = vst.msk [vmem:[#allocation2 + $0x108] sm:$0xff] %vm1546, %v1505
      %1581 = vst.msk [vmem:[#allocation2 + $0x110] sm:$0xff] %vm1546, %v1507
      %1582 = vst.msk [vmem:[#allocation2 + $0x118] sm:$0xff] %vm1546, %v1509
      %s1583 = sadd.s32 %s194, 37
      %s1584 = scalar_lea.vmem %s183, %s1583
      %v1585 = vld [vmem:[%s1584] sm:$0xff]
      %v1586 = vld [vmem:[%s1584 + $0x8] sm:$0xff]
      %v1587 = vld [vmem:[%s1584 + $0x10] sm:$0xff]
      %v1588 = vld [vmem:[%s1584 + $0x18] sm:$0xff]
      %v1589 = vld [vmem:[%s1584 + $0x20] sm:$0xff]
      %v1590 = vld [vmem:[%s1584 + $0x28] sm:$0xff]
      %v1591 = vld [vmem:[%s1584 + $0x30] sm:$0xff]
      %v1592 = vld [vmem:[%s1584 + $0x38] sm:$0xff]
      %v1593 = vld [vmem:[%s1584 + $0x40] sm:$0xff]
      %v1594 = vld [vmem:[%s1584 + $0x48] sm:$0xff]
      %v1595 = vld [vmem:[%s1584 + $0x50] sm:$0xff]
      %v1596 = vld [vmem:[%s1584 + $0x58] sm:$0xff]
      %v1597 = vld [vmem:[%s1584 + $0x60] sm:$0xff]
      %v1598 = vld [vmem:[%s1584 + $0x68] sm:$0xff]
      %v1599 = vld [vmem:[%s1584 + $0x70] sm:$0xff]
      %v1600 = vld [vmem:[%s1584 + $0x78] sm:$0xff]
      %v1601 = vld [vmem:[%s1584 + $0x80] sm:$0xff]
      %v1602 = vld [vmem:[%s1584 + $0x88] sm:$0xff]
      %v1603 = vld [vmem:[%s1584 + $0x90] sm:$0xff]
      %v1604 = vld [vmem:[%s1584 + $0x98] sm:$0xff]
      %v1605 = vld [vmem:[%s1584 + $0xa0] sm:$0xff]
      %v1606 = vld [vmem:[%s1584 + $0xa8] sm:$0xff]
      %v1607 = vld [vmem:[%s1584 + $0xb0] sm:$0xff]
      %v1608 = vld [vmem:[%s1584 + $0xb8] sm:$0xff]
      %v1609 = vld [vmem:[%s1584 + $0xc0] sm:$0xff]
      %v1610 = vld [vmem:[%s1584 + $0xc8] sm:$0xff]
      %v1611 = vld [vmem:[%s1584 + $0xd0] sm:$0xff]
      %v1612 = vld [vmem:[%s1584 + $0xd8] sm:$0xff]
      %v1613 = vld [vmem:[%s1584 + $0xe0] sm:$0xff]
      %v1614 = vld [vmem:[%s1584 + $0xe8] sm:$0xff]
      %v1615 = vld [vmem:[%s1584 + $0xf0] sm:$0xff]
      %v1616 = vld [vmem:[%s1584 + $0xf8] sm:$0xff]
      %v1617 = vld [vmem:[%s1584 + $0x100] sm:$0xff]
      %v1618 = vld [vmem:[%s1584 + $0x108] sm:$0xff]
      %v1619 = vld [vmem:[%s1584 + $0x110] sm:$0xff]
      %v1620 = vld [vmem:[%s1584 + $0x118] sm:$0xff]
      %1657 = vrot.lane.b32.xlu0 %v1585, 56
      %v1658 = vpop.permute.xlu0 %1657
      %1659 = vrot.lane.b32.xlu0 %v1586, 56
      %v1660 = vpop.permute.xlu0 %1659
      %1661 = vrot.lane.b32.xlu0 %v1587, 56
      %v1662 = vpop.permute.xlu0 %1661
      %1663 = vrot.lane.b32.xlu0 %v1588, 56
      %v1664 = vpop.permute.xlu0 %1663
      %1665 = vrot.lane.b32.xlu0 %v1589, 56
      %v1666 = vpop.permute.xlu0 %1665
      %1667 = vrot.lane.b32.xlu0 %v1590, 56
      %v1668 = vpop.permute.xlu0 %1667
      %1669 = vrot.lane.b32.xlu0 %v1591, 56
      %v1670 = vpop.permute.xlu0 %1669
      %1671 = vrot.lane.b32.xlu0 %v1592, 56
      %v1672 = vpop.permute.xlu0 %1671
      %1673 = vrot.lane.b32.xlu0 %v1593, 56
      %v1674 = vpop.permute.xlu0 %1673
      %1675 = vrot.lane.b32.xlu0 %v1594, 56
      %v1676 = vpop.permute.xlu0 %1675
      %1677 = vrot.lane.b32.xlu0 %v1595, 56
      %v1678 = vpop.permute.xlu0 %1677
      %1679 = vrot.lane.b32.xlu0 %v1596, 56
      %v1680 = vpop.permute.xlu0 %1679
      %1681 = vrot.lane.b32.xlu0 %v1597, 56
      %v1682 = vpop.permute.xlu0 %1681
      %1683 = vrot.lane.b32.xlu0 %v1598, 56
      %v1684 = vpop.permute.xlu0 %1683
      %1685 = vrot.lane.b32.xlu0 %v1599, 56
      %v1686 = vpop.permute.xlu0 %1685
      %1687 = vrot.lane.b32.xlu0 %v1600, 56
      %v1688 = vpop.permute.xlu0 %1687
      %1689 = vrot.lane.b32.xlu0 %v1601, 56
      %v1690 = vpop.permute.xlu0 %1689
      %1691 = vrot.lane.b32.xlu0 %v1602, 56
      %v1692 = vpop.permute.xlu0 %1691
      %1693 = vrot.lane.b32.xlu0 %v1603, 56
      %v1694 = vpop.permute.xlu0 %1693
      %1695 = vrot.lane.b32.xlu0 %v1604, 56
      %v1696 = vpop.permute.xlu0 %1695
      %1697 = vrot.lane.b32.xlu0 %v1605, 56
      %v1698 = vpop.permute.xlu0 %1697
      %1699 = vrot.lane.b32.xlu0 %v1606, 56
      %v1700 = vpop.permute.xlu0 %1699
      %1701 = vrot.lane.b32.xlu0 %v1607, 56
      %v1702 = vpop.permute.xlu0 %1701
      %1703 = vrot.lane.b32.xlu0 %v1608, 56
      %v1704 = vpop.permute.xlu0 %1703
      %1705 = vrot.lane.b32.xlu0 %v1609, 56
      %v1706 = vpop.permute.xlu0 %1705
      %1707 = vrot.lane.b32.xlu0 %v1610, 56
      %v1708 = vpop.permute.xlu0 %1707
      %1709 = vrot.lane.b32.xlu0 %v1611, 56
      %v1710 = vpop.permute.xlu0 %1709
      %1711 = vrot.lane.b32.xlu0 %v1612, 56
      %v1712 = vpop.permute.xlu0 %1711
      %1713 = vrot.lane.b32.xlu0 %v1613, 56
      %v1714 = vpop.permute.xlu0 %1713
      %1715 = vrot.lane.b32.xlu0 %v1614, 56
      %v1716 = vpop.permute.xlu0 %1715
      %1717 = vrot.lane.b32.xlu0 %v1615, 56
      %v1718 = vpop.permute.xlu0 %1717
      %1719 = vrot.lane.b32.xlu0 %v1616, 56
      %v1720 = vpop.permute.xlu0 %1719
      %1721 = vrot.lane.b32.xlu0 %v1617, 56
      %v1722 = vpop.permute.xlu0 %1721
      %1723 = vrot.lane.b32.xlu0 %v1618, 56
      %v1724 = vpop.permute.xlu0 %1723
      %1725 = vrot.lane.b32.xlu0 %v1619, 56
      %v1726 = vpop.permute.xlu0 %1725
      %1727 = vrot.lane.b32.xlu0 %v1620, 56
      %v1728 = vpop.permute.xlu0 %1727
      %vm1765 = vcmask 523712
      %1766 = vst.msk [vmem:[#allocation2] sm:$0xff] %vm1765, %v1658
      %1767 = vst.msk [vmem:[#allocation2 + $0x8] sm:$0xff] %vm1765, %v1660
      %1768 = vst.msk [vmem:[#allocation2 + $0x10] sm:$0xff] %vm1765, %v1662
      %1769 = vst.msk [vmem:[#allocation2 + $0x18] sm:$0xff] %vm1765, %v1664
      %1770 = vst.msk [vmem:[#allocation2 + $0x20] sm:$0xff] %vm1765, %v1666
      %1771 = vst.msk [vmem:[#allocation2 + $0x28] sm:$0xff] %vm1765, %v1668
      %1772 = vst.msk [vmem:[#allocation2 + $0x30] sm:$0xff] %vm1765, %v1670
      %1773 = vst.msk [vmem:[#allocation2 + $0x38] sm:$0xff] %vm1765, %v1672
      %1774 = vst.msk [vmem:[#allocation2 + $0x40] sm:$0xff] %vm1765, %v1674
      %1775 = vst.msk [vmem:[#allocation2 + $0x48] sm:$0xff] %vm1765, %v1676
      %1776 = vst.msk [vmem:[#allocation2 + $0x50] sm:$0xff] %vm1765, %v1678
      %1777 = vst.msk [vmem:[#allocation2 + $0x58] sm:$0xff] %vm1765, %v1680
      %1778 = vst.msk [vmem:[#allocation2 + $0x60] sm:$0xff] %vm1765, %v1682
      %1779 = vst.msk [vmem:[#allocation2 + $0x68] sm:$0xff] %vm1765, %v1684
      %1780 = vst.msk [vmem:[#allocation2 + $0x70] sm:$0xff] %vm1765, %v1686
      %1781 = vst.msk [vmem:[#allocation2 + $0x78] sm:$0xff] %vm1765, %v1688
      %1782 = vst.msk [vmem:[#allocation2 + $0x80] sm:$0xff] %vm1765, %v1690
      %1783 = vst.msk [vmem:[#allocation2 + $0x88] sm:$0xff] %vm1765, %v1692
      %1784 = vst.msk [vmem:[#allocation2 + $0x90] sm:$0xff] %vm1765, %v1694
      %1785 = vst.msk [vmem:[#allocation2 + $0x98] sm:$0xff] %vm1765, %v1696
      %1786 = vst.msk [vmem:[#allocation2 + $0xa0] sm:$0xff] %vm1765, %v1698
      %1787 = vst.msk [vmem:[#allocation2 + $0xa8] sm:$0xff] %vm1765, %v1700
      %1788 = vst.msk [vmem:[#allocation2 + $0xb0] sm:$0xff] %vm1765, %v1702
      %1789 = vst.msk [vmem:[#allocation2 + $0xb8] sm:$0xff] %vm1765, %v1704
      %1790 = vst.msk [vmem:[#allocation2 + $0xc0] sm:$0xff] %vm1765, %v1706
      %1791 = vst.msk [vmem:[#allocation2 + $0xc8] sm:$0xff] %vm1765, %v1708
      %1792 = vst.msk [vmem:[#allocation2 + $0xd0] sm:$0xff] %vm1765, %v1710
      %1793 = vst.msk [vmem:[#allocation2 + $0xd8] sm:$0xff] %vm1765, %v1712
      %1794 = vst.msk [vmem:[#allocation2 + $0xe0] sm:$0xff] %vm1765, %v1714
      %1795 = vst.msk [vmem:[#allocation2 + $0xe8] sm:$0xff] %vm1765, %v1716
      %1796 = vst.msk [vmem:[#allocation2 + $0xf0] sm:$0xff] %vm1765, %v1718
      %1797 = vst.msk [vmem:[#allocation2 + $0xf8] sm:$0xff] %vm1765, %v1720
      %1798 = vst.msk [vmem:[#allocation2 + $0x100] sm:$0xff] %vm1765, %v1722
      %1799 = vst.msk [vmem:[#allocation2 + $0x108] sm:$0xff] %vm1765, %v1724
      %1800 = vst.msk [vmem:[#allocation2 + $0x110] sm:$0xff] %vm1765, %v1726
      %1801 = vst.msk [vmem:[#allocation2 + $0x118] sm:$0xff] %vm1765, %v1728
      %s1802 = sadd.s32 %s194, 38
      %s1803 = scalar_lea.vmem %s183, %s1802
      %v1804 = vld [vmem:[%s1803] sm:$0xff]
      %v1805 = vld [vmem:[%s1803 + $0x8] sm:$0xff]
      %v1806 = vld [vmem:[%s1803 + $0x10] sm:$0xff]
      %v1807 = vld [vmem:[%s1803 + $0x18] sm:$0xff]
      %v1808 = vld [vmem:[%s1803 + $0x20] sm:$0xff]
      %v1809 = vld [vmem:[%s1803 + $0x28] sm:$0xff]
      %v1810 = vld [vmem:[%s1803 + $0x30] sm:$0xff]
      %v1811 = vld [vmem:[%s1803 + $0x38] sm:$0xff]
      %v1812 = vld [vmem:[%s1803 + $0x40] sm:$0xff]
      %v1813 = vld [vmem:[%s1803 + $0x48] sm:$0xff]
      %v1814 = vld [vmem:[%s1803 + $0x50] sm:$0xff]
      %v1815 = vld [vmem:[%s1803 + $0x58] sm:$0xff]
      %v1816 = vld [vmem:[%s1803 + $0x60] sm:$0xff]
      %v1817 = vld [vmem:[%s1803 + $0x68] sm:$0xff]
      %v1818 = vld [vmem:[%s1803 + $0x70] sm:$0xff]
      %v1819 = vld [vmem:[%s1803 + $0x78] sm:$0xff]
      %v1820 = vld [vmem:[%s1803 + $0x80] sm:$0xff]
      %v1821 = vld [vmem:[%s1803 + $0x88] sm:$0xff]
      %v1822 = vld [vmem:[%s1803 + $0x90] sm:$0xff]
      %v1823 = vld [vmem:[%s1803 + $0x98] sm:$0xff]
      %v1824 = vld [vmem:[%s1803 + $0xa0] sm:$0xff]
      %v1825 = vld [vmem:[%s1803 + $0xa8] sm:$0xff]
      %v1826 = vld [vmem:[%s1803 + $0xb0] sm:$0xff]
      %v1827 = vld [vmem:[%s1803 + $0xb8] sm:$0xff]
      %v1828 = vld [vmem:[%s1803 + $0xc0] sm:$0xff]
      %v1829 = vld [vmem:[%s1803 + $0xc8] sm:$0xff]
      %v1830 = vld [vmem:[%s1803 + $0xd0] sm:$0xff]
      %v1831 = vld [vmem:[%s1803 + $0xd8] sm:$0xff]
      %v1832 = vld [vmem:[%s1803 + $0xe0] sm:$0xff]
      %v1833 = vld [vmem:[%s1803 + $0xe8] sm:$0xff]
      %v1834 = vld [vmem:[%s1803 + $0xf0] sm:$0xff]
      %v1835 = vld [vmem:[%s1803 + $0xf8] sm:$0xff]
      %v1836 = vld [vmem:[%s1803 + $0x100] sm:$0xff]
      %v1837 = vld [vmem:[%s1803 + $0x108] sm:$0xff]
      %v1838 = vld [vmem:[%s1803 + $0x110] sm:$0xff]
      %v1839 = vld [vmem:[%s1803 + $0x118] sm:$0xff]
      %1876 = vrot.lane.b32.xlu0 %v1804, 64
      %v1877 = vpop.permute.xlu0 %1876
      %1878 = vrot.lane.b32.xlu0 %v1805, 64
      %v1879 = vpop.permute.xlu0 %1878
      %1880 = vrot.lane.b32.xlu0 %v1806, 64
      %v1881 = vpop.permute.xlu0 %1880
      %1882 = vrot.lane.b32.xlu0 %v1807, 64
      %v1883 = vpop.permute.xlu0 %1882
      %1884 = vrot.lane.b32.xlu0 %v1808, 64
      %v1885 = vpop.permute.xlu0 %1884
      %1886 = vrot.lane.b32.xlu0 %v1809, 64
      %v1887 = vpop.permute.xlu0 %1886
      %1888 = vrot.lane.b32.xlu0 %v1810, 64
      %v1889 = vpop.permute.xlu0 %1888
      %1890 = vrot.lane.b32.xlu0 %v1811, 64
      %v1891 = vpop.permute.xlu0 %1890
      %1892 = vrot.lane.b32.xlu0 %v1812, 64
      %v1893 = vpop.permute.xlu0 %1892
      %1894 = vrot.lane.b32.xlu0 %v1813, 64
      %v1895 = vpop.permute.xlu0 %1894
      %1896 = vrot.lane.b32.xlu0 %v1814, 64
      %v1897 = vpop.permute.xlu0 %1896
      %1898 = vrot.lane.b32.xlu0 %v1815, 64
      %v1899 = vpop.permute.xlu0 %1898
      %1900 = vrot.lane.b32.xlu0 %v1816, 64
      %v1901 = vpop.permute.xlu0 %1900
      %1902 = vrot.lane.b32.xlu0 %v1817, 64
      %v1903 = vpop.permute.xlu0 %1902
      %1904 = vrot.lane.b32.xlu0 %v1818, 64
      %v1905 = vpop.permute.xlu0 %1904
      %1906 = vrot.lane.b32.xlu0 %v1819, 64
      %v1907 = vpop.permute.xlu0 %1906
      %1908 = vrot.lane.b32.xlu0 %v1820, 64
      %v1909 = vpop.permute.xlu0 %1908
      %1910 = vrot.lane.b32.xlu0 %v1821, 64
      %v1911 = vpop.permute.xlu0 %1910
      %1912 = vrot.lane.b32.xlu0 %v1822, 64
      %v1913 = vpop.permute.xlu0 %1912
      %1914 = vrot.lane.b32.xlu0 %v1823, 64
      %v1915 = vpop.permute.xlu0 %1914
      %1916 = vrot.lane.b32.xlu0 %v1824, 64
      %v1917 = vpop.permute.xlu0 %1916
      %1918 = vrot.lane.b32.xlu0 %v1825, 64
      %v1919 = vpop.permute.xlu0 %1918
      %1920 = vrot.lane.b32.xlu0 %v1826, 64
      %v1921 = vpop.permute.xlu0 %1920
      %1922 = vrot.lane.b32.xlu0 %v1827, 64
      %v1923 = vpop.permute.xlu0 %1922
      %1924 = vrot.lane.b32.xlu0 %v1828, 64
      %v1925 = vpop.permute.xlu0 %1924
      %1926 = vrot.lane.b32.xlu0 %v1829, 64
      %v1927 = vpop.permute.xlu0 %1926
      %1928 = vrot.lane.b32.xlu0 %v1830, 64
      %v1929 = vpop.permute.xlu0 %1928
      %1930 = vrot.lane.b32.xlu0 %v1831, 64
      %v1931 = vpop.permute.xlu0 %1930
      %1932 = vrot.lane.b32.xlu0 %v1832, 64
      %v1933 = vpop.permute.xlu0 %1932
      %1934 = vrot.lane.b32.xlu0 %v1833, 64
      %v1935 = vpop.permute.xlu0 %1934
      %1936 = vrot.lane.b32.xlu0 %v1834, 64
      %v1937 = vpop.permute.xlu0 %1936
      %1938 = vrot.lane.b32.xlu0 %v1835, 64
      %v1939 = vpop.permute.xlu0 %1938
      %1940 = vrot.lane.b32.xlu0 %v1836, 64
      %v1941 = vpop.permute.xlu0 %1940
      %1942 = vrot.lane.b32.xlu0 %v1837, 64
      %v1943 = vpop.permute.xlu0 %1942
      %1944 = vrot.lane.b32.xlu0 %v1838, 64
      %v1945 = vpop.permute.xlu0 %1944
      %1946 = vrot.lane.b32.xlu0 %v1839, 64
      %v1947 = vpop.permute.xlu0 %1946
      %vm1984 = vcmask 589312
      %1985 = vst.msk [vmem:[#allocation2] sm:$0xff] %vm1984, %v1877
      %1986 = vst.msk [vmem:[#allocation2 + $0x8] sm:$0xff] %vm1984, %v1879
      %1987 = vst.msk [vmem:[#allocation2 + $0x10] sm:$0xff] %vm1984, %v1881
      %1988 = vst.msk [vmem:[#allocation2 + $0x18] sm:$0xff] %vm1984, %v1883
      %1989 = vst.msk [vmem:[#allocation2 + $0x20] sm:$0xff] %vm1984, %v1885
      %1990 = vst.msk [vmem:[#allocation2 + $0x28] sm:$0xff] %vm1984, %v1887
      %1991 = vst.msk [vmem:[#allocation2 + $0x30] sm:$0xff] %vm1984, %v1889
      %1992 = vst.msk [vmem:[#allocation2 + $0x38] sm:$0xff] %vm1984, %v1891
      %1993 = vst.msk [vmem:[#allocation2 + $0x40] sm:$0xff] %vm1984, %v1893
      %1994 = vst.msk [vmem:[#allocation2 + $0x48] sm:$0xff] %vm1984, %v1895
      %1995 = vst.msk [vmem:[#allocation2 + $0x50] sm:$0xff] %vm1984, %v1897
      %1996 = vst.msk [vmem:[#allocation2 + $0x58] sm:$0xff] %vm1984, %v1899
      %1997 = vst.msk [vmem:[#allocation2 + $0x60] sm:$0xff] %vm1984, %v1901
      %1998 = vst.msk [vmem:[#allocation2 + $0x68] sm:$0xff] %vm1984, %v1903
      %1999 = vst.msk [vmem:[#allocation2 + $0x70] sm:$0xff] %vm1984, %v1905
      %2000 = vst.msk [vmem:[#allocation2 + $0x78] sm:$0xff] %vm1984, %v1907
      %2001 = vst.msk [vmem:[#allocation2 + $0x80] sm:$0xff] %vm1984, %v1909
      %2002 = vst.msk [vmem:[#allocation2 + $0x88] sm:$0xff] %vm1984, %v1911
      %2003 = vst.msk [vmem:[#allocation2 + $0x90] sm:$0xff] %vm1984, %v1913
      %2004 = vst.msk [vmem:[#allocation2 + $0x98] sm:$0xff] %vm1984, %v1915
      %2005 = vst.msk [vmem:[#allocation2 + $0xa0] sm:$0xff] %vm1984, %v1917
      %2006 = vst.msk [vmem:[#allocation2 + $0xa8] sm:$0xff] %vm1984, %v1919
      %2007 = vst.msk [vmem:[#allocation2 + $0xb0] sm:$0xff] %vm1984, %v1921
      %2008 = vst.msk [vmem:[#allocation2 + $0xb8] sm:$0xff] %vm1984, %v1923
      %2009 = vst.msk [vmem:[#allocation2 + $0xc0] sm:$0xff] %vm1984, %v1925
      %2010 = vst.msk [vmem:[#allocation2 + $0xc8] sm:$0xff] %vm1984, %v1927
      %2011 = vst.msk [vmem:[#allocation2 + $0xd0] sm:$0xff] %vm1984, %v1929
      %2012 = vst.msk [vmem:[#allocation2 + $0xd8] sm:$0xff] %vm1984, %v1931
      %2013 = vst.msk [vmem:[#allocation2 + $0xe0] sm:$0xff] %vm1984, %v1933
      %2014 = vst.msk [vmem:[#allocation2 + $0xe8] sm:$0xff] %vm1984, %v1935
      %2015 = vst.msk [vmem:[#allocation2 + $0xf0] sm:$0xff] %vm1984, %v1937
      %2016 = vst.msk [vmem:[#allocation2 + $0xf8] sm:$0xff] %vm1984, %v1939
      %2017 = vst.msk [vmem:[#allocation2 + $0x100] sm:$0xff] %vm1984, %v1941
      %2018 = vst.msk [vmem:[#allocation2 + $0x108] sm:$0xff] %vm1984, %v1943
      %2019 = vst.msk [vmem:[#allocation2 + $0x110] sm:$0xff] %vm1984, %v1945
      %2020 = vst.msk [vmem:[#allocation2 + $0x118] sm:$0xff] %vm1984, %v1947
      %v2021 = vld [vmem:[#allocation2] sm:$0xff]
      %v2022 = vld [vmem:[#allocation2 + $0x8] sm:$0xff]
      %v2023 = vld [vmem:[#allocation2 + $0x10] sm:$0xff]
      %v2024 = vld [vmem:[#allocation2 + $0x18] sm:$0xff]
      %v2025 = vld [vmem:[#allocation2 + $0x20] sm:$0xff]
      %v2026 = vld [vmem:[#allocation2 + $0x28] sm:$0xff]
      %v2027 = vld [vmem:[#allocation2 + $0x30] sm:$0xff]
      %v2028 = vld [vmem:[#allocation2 + $0x38] sm:$0xff]
      %v2029 = vld [vmem:[#allocation2 + $0x40] sm:$0xff]
      %v2030 = vld [vmem:[#allocation2 + $0x48] sm:$0xff]
      %v2031 = vld [vmem:[#allocation2 + $0x50] sm:$0xff]
      %v2032 = vld [vmem:[#allocation2 + $0x58] sm:$0xff]
      %v2033 = vld [vmem:[#allocation2 + $0x60] sm:$0xff]
      %v2034 = vld [vmem:[#allocation2 + $0x68] sm:$0xff]
      %v2035 = vld [vmem:[#allocation2 + $0x70] sm:$0xff]
      %v2036 = vld [vmem:[#allocation2 + $0x78] sm:$0xff]
      %v2037 = vld [vmem:[#allocation2 + $0x80] sm:$0xff]
      %v2038 = vld [vmem:[#allocation2 + $0x88] sm:$0xff]
      %v2039 = vld [vmem:[#allocation2 + $0x90] sm:$0xff]
      %v2040 = vld [vmem:[#allocation2 + $0x98] sm:$0xff]
      %v2041 = vld [vmem:[#allocation2 + $0xa0] sm:$0xff]
      %v2042 = vld [vmem:[#allocation2 + $0xa8] sm:$0xff]
      %v2043 = vld [vmem:[#allocation2 + $0xb0] sm:$0xff]
      %v2044 = vld [vmem:[#allocation2 + $0xb8] sm:$0xff]
      %v2045 = vld [vmem:[#allocation2 + $0xc0] sm:$0xff]
      %v2046 = vld [vmem:[#allocation2 + $0xc8] sm:$0xff]
      %v2047 = vld [vmem:[#allocation2 + $0xd0] sm:$0xff]
      %v2048 = vld [vmem:[#allocation2 + $0xd8] sm:$0xff]
      %v2049 = vld [vmem:[#allocation2 + $0xe0] sm:$0xff]
      %v2050 = vld [vmem:[#allocation2 + $0xe8] sm:$0xff]
      %v2051 = vld [vmem:[#allocation2 + $0xf0] sm:$0xff]
      %v2052 = vld [vmem:[#allocation2 + $0xf8] sm:$0xff]
      %v2053 = vld [vmem:[#allocation2 + $0x100] sm:$0xff]
      %v2054 = vld [vmem:[#allocation2 + $0x108] sm:$0xff]
      %v2055 = vld [vmem:[#allocation2 + $0x110] sm:$0xff]
      %v2056 = vld [vmem:[#allocation2 + $0x118] sm:$0xff]
      %v2057 = vld [vmem:[%s1] sm:$0xff]
      %v2058 = vld [vmem:[%s1 + $0x8] sm:$0xff]
      %v2059 = vld [vmem:[%s1 + $0x10] sm:$0xff]
      %v2060 = vld [vmem:[%s1 + $0x18] sm:$0xff]
      %v2061 = vld [vmem:[%s1 + $0x20] sm:$0xff]
      %v2062 = vld [vmem:[%s1 + $0x28] sm:$0xff]
      %v2063 = vld [vmem:[%s1 + $0x30] sm:$0xff]
      %v2064 = vld [vmem:[%s1 + $0x38] sm:$0xff]
      %v2065 = vld [vmem:[%s1 + $0x40] sm:$0xff]
      %v2066 = vld [vmem:[%s2] sm:$0x1]
      %v2068 = vperm.slane %v2066, 0
      %vm2070 = vcmask 588800
      %v2072 = vsel %vm2070, %v2021, 0
      %v2075 = vsel %vm2070, %v2022, 0
      %v2078 = vsel %vm2070, %v2023, 0
      %v2081 = vsel %vm2070, %v2024, 0
      %v2084 = vsel %vm2070, %v2025, 0
      %v2087 = vsel %vm2070, %v2026, 0
      %v2090 = vsel %vm2070, %v2027, 0
      %v2093 = vsel %vm2070, %v2028, 0
      %v2096 = vsel %vm2070, %v2029, 0
      %v2099 = vsel %vm2070, %v2030, 0
      %v2102 = vsel %vm2070, %v2031, 0
      %v2105 = vsel %vm2070, %v2032, 0
      %v2108 = vsel %vm2070, %v2033, 0
      %v2111 = vsel %vm2070, %v2034, 0
      %v2114 = vsel %vm2070, %v2035, 0
      %v2117 = vsel %vm2070, %v2036, 0
      %v2120 = vsel %vm2070, %v2037, 0
      %v2123 = vsel %vm2070, %v2038, 0
      %v2126 = vsel %vm2070, %v2039, 0
      %v2129 = vsel %vm2070, %v2040, 0
      %v2132 = vsel %vm2070, %v2041, 0
      %v2135 = vsel %vm2070, %v2042, 0
      %v2138 = vsel %vm2070, %v2043, 0
      %v2141 = vsel %vm2070, %v2044, 0
      %v2144 = vsel %vm2070, %v2045, 0
      %v2147 = vsel %vm2070, %v2046, 0
      %v2150 = vsel %vm2070, %v2047, 0
      %v2153 = vsel %vm2070, %v2048, 0
      %v2156 = vsel %vm2070, %v2049, 0
      %v2159 = vsel %vm2070, %v2050, 0
      %v2162 = vsel %vm2070, %v2051, 0
      %v2165 = vsel %vm2070, %v2052, 0
      %v2168 = vsel %vm2070, %v2053, 0
      %v2171 = vsel %vm2070, %v2054, 0
      %v2174 = vsel %vm2070, %v2055, 0
      %v2177 = vsel %vm2070, %v2056, 0
      %2179 = vmatpush.msra.mxu0 0.0
      %2180 = vmatpush.msra.mxu0 0.0
      %2181 = vmatpush.msra.mxu0 0.0
      %2182 = vmatpush.msra.mxu0 0.0
      %2183 = vmatpush.msra.mxu0 0.0
      %2184 = vmatpush.msra.mxu0 0.0
      %2185 = vmatpush.msra.mxu0 0.0
      %2186 = vmatpush.msra.mxu0 %v2065
      %2187 = vmatpush.msra.mxu0 %v2064
      %2188 = vmatpush.msra.mxu0 %v2063
      %2189 = vmatpush.msra.mxu0 %v2062
      %2190 = vmatpush.msra.mxu0 %v2061
      %2191 = vmatpush.msra.mxu0 %v2060
      %2192 = vmatpush.msra.mxu0 %v2059
      %2193 = vmatpush.msra.mxu0 %v2058
      %2194 = vmatpush.msra.mxu0 %v2057
      %2195 = vmatmul.f32.gmra.mxu0 %v2072
      %v2196 = vpop.f32.mrf.mxu0
      %v2197 = vadd.f32 %v2068, %v2196
      %2198 = vmatmul.f32.gmra.mxu0 %v2075
      %v2199 = vpop.f32.mrf.mxu0
      %v2200 = vadd.f32 %v2068, %v2199
      %2201 = vmatmul.f32.gmra.mxu0 %v2078
      %v2202 = vpop.f32.mrf.mxu0
      %v2203 = vadd.f32 %v2068, %v2202
      %2204 = vmatmul.f32.gmra.mxu0 %v2081
      %v2205 = vpop.f32.mrf.mxu0
      %v2206 = vadd.f32 %v2068, %v2205
      %2207 = vmatmul.f32.gmra.mxu0 %v2084
      %v2208 = vpop.f32.mrf.mxu0
      %v2209 = vadd.f32 %v2068, %v2208
      %2210 = vmatmul.f32.gmra.mxu0 %v2087
      %v2211 = vpop.f32.mrf.mxu0
      %v2212 = vadd.f32 %v2068, %v2211
      %2213 = vmatmul.f32.gmra.mxu0 %v2090
      %v2214 = vpop.f32.mrf.mxu0
      %v2215 = vadd.f32 %v2068, %v2214
      %2216 = vmatmul.f32.gmra.mxu0 %v2093
      %v2217 = vpop.f32.mrf.mxu0
      %v2218 = vadd.f32 %v2068, %v2217
      %2219 = vmatmul.f32.gmra.mxu0 %v2096
      %v2220 = vpop.f32.mrf.mxu0
      %v2221 = vadd.f32 %v2068, %v2220
      %2222 = vmatmul.f32.gmra.mxu0 %v2099
      %v2223 = vpop.f32.mrf.mxu0
      %v2224 = vadd.f32 %v2068, %v2223
      %2225 = vmatmul.f32.gmra.mxu0 %v2102
      %v2226 = vpop.f32.mrf.mxu0
      %v2227 = vadd.f32 %v2068, %v2226
      %2228 = vmatmul.f32.gmra.mxu0 %v2105
      %v2229 = vpop.f32.mrf.mxu0
      %v2230 = vadd.f32 %v2068, %v2229
      %2231 = vmatmul.f32.gmra.mxu0 %v2108
      %v2232 = vpop.f32.mrf.mxu0
      %v2233 = vadd.f32 %v2068, %v2232
      %2234 = vmatmul.f32.gmra.mxu0 %v2111
      %v2235 = vpop.f32.mrf.mxu0
      %v2236 = vadd.f32 %v2068, %v2235
      %2237 = vmatmul.f32.gmra.mxu0 %v2114
      %v2238 = vpop.f32.mrf.mxu0
      %v2239 = vadd.f32 %v2068, %v2238
      %2240 = vmatmul.f32.gmra.mxu0 %v2117
      %v2241 = vpop.f32.mrf.mxu0
      %v2242 = vadd.f32 %v2068, %v2241
      %2243 = vmatmul.f32.gmra.mxu0 %v2120
      %v2244 = vpop.f32.mrf.mxu0
      %v2245 = vadd.f32 %v2068, %v2244
      %2246 = vmatmul.f32.gmra.mxu0 %v2123
      %v2247 = vpop.f32.mrf.mxu0
      %v2248 = vadd.f32 %v2068, %v2247
      %2249 = vmatmul.f32.gmra.mxu0 %v2126
      %v2250 = vpop.f32.mrf.mxu0
      %v2251 = vadd.f32 %v2068, %v2250
      %2252 = vmatmul.f32.gmra.mxu0 %v2129
      %v2253 = vpop.f32.mrf.mxu0
      %v2254 = vadd.f32 %v2068, %v2253
      %2255 = vmatmul.f32.gmra.mxu0 %v2132
      %v2256 = vpop.f32.mrf.mxu0
      %v2257 = vadd.f32 %v2068, %v2256
      %2258 = vmatmul.f32.gmra.mxu0 %v2135
      %v2259 = vpop.f32.mrf.mxu0
      %v2260 = vadd.f32 %v2068, %v2259
      %2261 = vmatmul.f32.gmra.mxu0 %v2138
      %v2262 = vpop.f32.mrf.mxu0
      %v2263 = vadd.f32 %v2068, %v2262
      %2264 = vmatmul.f32.gmra.mxu0 %v2141
      %v2265 = vpop.f32.mrf.mxu0
      %v2266 = vadd.f32 %v2068, %v2265
      %2267 = vmatmul.f32.gmra.mxu0 %v2144
      %v2268 = vpop.f32.mrf.mxu0
      %v2269 = vadd.f32 %v2068, %v2268
      %2270 = vmatmul.f32.gmra.mxu0 %v2147
      %v2271 = vpop.f32.mrf.mxu0
      %v2272 = vadd.f32 %v2068, %v2271
      %2273 = vmatmul.f32.gmra.mxu0 %v2150
      %v2274 = vpop.f32.mrf.mxu0
      %v2275 = vadd.f32 %v2068, %v2274
      %2276 = vmatmul.f32.gmra.mxu0 %v2153
      %v2277 = vpop.f32.mrf.mxu0
      %v2278 = vadd.f32 %v2068, %v2277
      %2279 = vmatmul.f32.gmra.mxu0 %v2156
      %v2280 = vpop.f32.mrf.mxu0
      %v2281 = vadd.f32 %v2068, %v2280
      %2282 = vmatmul.f32.gmra.mxu0 %v2159
      %v2283 = vpop.f32.mrf.mxu0
      %v2284 = vadd.f32 %v2068, %v2283
      %2285 = vmatmul.f32.gmra.mxu0 %v2162
      %v2286 = vpop.f32.mrf.mxu0
      %v2287 = vadd.f32 %v2068, %v2286
      %2288 = vmatmul.f32.gmra.mxu0 %v2165
      %v2289 = vpop.f32.mrf.mxu0
      %v2290 = vadd.f32 %v2068, %v2289
      %2291 = vmatmul.f32.gmra.mxu0 %v2168
      %v2292 = vpop.f32.mrf.mxu0
      %v2293 = vadd.f32 %v2068, %v2292
      %2294 = vmatmul.f32.gmra.mxu0 %v2171
      %v2295 = vpop.f32.mrf.mxu0
      %v2296 = vadd.f32 %v2068, %v2295
      %2297 = vmatmul.f32.gmra.mxu0 %v2174
      %v2298 = vpop.f32.mrf.mxu0
      %v2299 = vadd.f32 %v2068, %v2298
      %2300 = vmatmul.f32.gmra.mxu0 %v2177
      %v2301 = vpop.f32.mrf.mxu0
      %v2302 = vadd.f32 %v2068, %v2301
      %2303 = vdwg.mxu0
      %2304 = vst.msk [vmem:[%s192] sm:$0xff] %vm232, %v2197
      %2305 = vst.msk [vmem:[%s192 + $0x8] sm:$0xff] %vm232, %v2200
      %2306 = vst.msk [vmem:[%s192 + $0x10] sm:$0xff] %vm232, %v2203
      %2307 = vst.msk [vmem:[%s192 + $0x18] sm:$0xff] %vm232, %v2206
      %2308 = vst.msk [vmem:[%s192 + $0x20] sm:$0xff] %vm232, %v2209
      %2309 = vst.msk [vmem:[%s192 + $0x28] sm:$0xff] %vm232, %v2212
      %2310 = vst.msk [vmem:[%s192 + $0x30] sm:$0xff] %vm232, %v2215
      %2311 = vst.msk [vmem:[%s192 + $0x38] sm:$0xff] %vm232, %v2218
      %2312 = vst.msk [vmem:[%s192 + $0x40] sm:$0xff] %vm232, %v2221
      %2313 = vst.msk [vmem:[%s192 + $0x48] sm:$0xff] %vm232, %v2224
      %2314 = vst.msk [vmem:[%s192 + $0x50] sm:$0xff] %vm232, %v2227
      %2315 = vst.msk [vmem:[%s192 + $0x58] sm:$0xff] %vm232, %v2230
      %2316 = vst.msk [vmem:[%s192 + $0x60] sm:$0xff] %vm232, %v2233
      %2317 = vst.msk [vmem:[%s192 + $0x68] sm:$0xff] %vm232, %v2236
      %2318 = vst.msk [vmem:[%s192 + $0x70] sm:$0xff] %vm232, %v2239
      %2319 = vst.msk [vmem:[%s192 + $0x78] sm:$0xff] %vm232, %v2242
      %2320 = vst.msk [vmem:[%s192 + $0x80] sm:$0xff] %vm232, %v2245
      %2321 = vst.msk [vmem:[%s192 + $0x88] sm:$0xff] %vm232, %v2248
      %2322 = vst.msk [vmem:[%s192 + $0x90] sm:$0xff] %vm232, %v2251
      %2323 = vst.msk [vmem:[%s192 + $0x98] sm:$0xff] %vm232, %v2254
      %2324 = vst.msk [vmem:[%s192 + $0xa0] sm:$0xff] %vm232, %v2257
      %2325 = vst.msk [vmem:[%s192 + $0xa8] sm:$0xff] %vm232, %v2260
      %2326 = vst.msk [vmem:[%s192 + $0xb0] sm:$0xff] %vm232, %v2263
      %2327 = vst.msk [vmem:[%s192 + $0xb8] sm:$0xff] %vm232, %v2266
      %2328 = vst.msk [vmem:[%s192 + $0xc0] sm:$0xff] %vm232, %v2269
      %2329 = vst.msk [vmem:[%s192 + $0xc8] sm:$0xff] %vm232, %v2272
      %2330 = vst.msk [vmem:[%s192 + $0xd0] sm:$0xff] %vm232, %v2275
      %2331 = vst.msk [vmem:[%s192 + $0xd8] sm:$0xff] %vm232, %v2278
      %2332 = vst.msk [vmem:[%s192 + $0xe0] sm:$0xff] %vm232, %v2281
      %2333 = vst.msk [vmem:[%s192 + $0xe8] sm:$0xff] %vm232, %v2284
      %2334 = vst.msk [vmem:[%s192 + $0xf0] sm:$0xff] %vm232, %v2287
      %2335 = vst.msk [vmem:[%s192 + $0xf8] sm:$0xff] %vm232, %v2290
      %2336 = vst.msk [vmem:[%s192 + $0x100] sm:$0xff] %vm232, %v2293
      %2337 = vst.msk [vmem:[%s192 + $0x108] sm:$0xff] %vm232, %v2296
      %2338 = vst.msk [vmem:[%s192 + $0x110] sm:$0xff] %vm232, %v2299
      %2339 = vst.msk [vmem:[%s192 + $0x118] sm:$0xff] %vm232, %v2302
      %s2340 = smul.u32 36, %s19
      %p2341 = scmp.lt.s32.totalorder %s18, 1
      %s2342 = scalar_select %p2341, %s18, 1
      %p2343 = scmp.lt.s32.totalorder %s2340, 35
      %s2344 = scalar_select %p2343, %s2340, 35
      %s2345 = smul.addr %s2342, 36
      %s2346 = sadd.s32 %s2344, %s2345
      %s2347 = smul.addr %s2346, 8
      %s2348 = scalar_lea.vmem %s3, %s2347
      // Predicated region
      $region33: #{tpu_custom_call.1} parent=31 // pred_check
        %p2349 = pneg %p114
      $region34: #{tpu_custom_call.1} parent=31 // pred_check_branch
        %2351 = sbr.rel (%p2349) target = $region36
      $region35: #{tpu_custom_call.1} parent=31 // pred_region
        %s2352 = smul.u32 36, %s19
      $region36: #{tpu_custom_call.1} parent=31 // pred_fallthru
        _
    $region32: #{tpu_custom_call.1} parent=5 // pred_fallthru
      _
    %p2353 = scmp.le.s32.totalorder 2, %s9
    // Predicated region
    $region37: #{tpu_custom_call.1} parent=5 // pred_check
      %p2354 = pneg %p2353
    $region38: #{tpu_custom_call.1} parent=5 // pred_check_branch
      %2356 = sbr.rel (%p2354) target = $region40
    $region39: #{tpu_custom_call.1} parent=5 // pred_region
      %s2357 = ssub.s32 %s9, 2
      // Predicated region
      $region41: #{tpu_custom_call.1} parent=39 // pred_check
        %p2358 = pneg %p120
      $region42: #{tpu_custom_call.1} parent=39 // pred_check_branch
        %2360 = sbr.rel (%p2358) target = $region44
      $region43: #{tpu_custom_call.1} parent=39 // pred_region
        %s2361 = smul.u32 36, %s21
        %p2362 = scmp.lt.s32.totalorder %s20, 1
        %s2363 = scalar_select %p2362, %s20, 1
        %p2364 = scmp.lt.s32.totalorder %s2361, 35
        %s2365 = scalar_select %p2364, %s2361, 35
        %s2366 = smul.addr %s2363, 36
        %s2367 = sadd.s32 %s2365, %s2366
        %s2368 = smul.addr %s2367, 8
        %s2369 = scalar_lea.vmem %s3, %s2368
      $region44: #{tpu_custom_call.1} parent=39 // pred_fallthru
        _
    $region40: #{tpu_custom_call.1} parent=5 // pred_fallthru
      _
  $region6: #{tpu_custom_call.1} parent=0 // loop_footer
    %s13 = sadd.s32 1, %s9
  $region7: #{tpu_custom_call.1} parent=0 // loop_footer_branch
    %8 = sbr.rel target = $region3
  $region8: #{tpu_custom_call.1} parent=0 // loop_exit
    _

</llo_original>
